<compile_context>
chip_gen: v7x
topology: tpu7x:2x2x1
jax: 0.10.0
libtpu: 0.0.40
codegen_flags: <defaults>
</compile_context>

<pallas_src>
import jax
import jax.numpy as jnp
from jax.experimental import pallas as pl
from jax.experimental.pallas import tpu as pltpu


def _round_up(v, m):
    return (v + m - 1) // m * m


def _attention_cnn_kernel(x_ref, wf_ref, bf_ref, wfc_ref, bfc_ref, out_ref):
    # x_ref:   (C_in, L*tile_b)     bf16  (lane order: l-major, b-minor)
    # wf_ref:  (k, C_out+A, C_in)   bf16  fused [W_conv ; W_att@W_conv] taps
    # bf_ref:  (C_out+A, 1)         f32   fused bias
    # wfc_ref: (n_pad, C_out)       bf16  classifier (rows zero-padded to 8)
    # bfc_ref: (n_pad, 1)           f32
    # out_ref: (n_pad, tile_b)      f32   (batch on lanes)
    tb = out_ref.shape[1]
    k, ca, _ = wf_ref.shape
    c_out = wfc_ref.shape[1]
    l = x_ref.shape[1] // tb
    l_out = l - k + 1
    m = l_out * tb

    # Fused Conv1d + attention projection: k accumulating MXU matmuls; each
    # tap contracts over C_in against a 128-aligned lane-window of the x tile.
    fused = jnp.dot(wf_ref[0], x_ref[:, 0:m],
                    preferred_element_type=jnp.float32)
    for dk in range(1, k):
        fused = fused + jnp.dot(wf_ref[dk], x_ref[:, dk * tb:dk * tb + m],
                                preferred_element_type=jnp.float32)
    fused = fused + bf_ref[...]                      # (C_out+A, m) f32

    conv = fused[:c_out, :]                          # (C_out, m)
    scores = fused[c_out:, :]                        # (A, m)

    # Softmax over the attention dim (sublane axis; A is tiny), EUP reciprocal.
    mx = jnp.max(scores, axis=0, keepdims=True)
    e = jnp.exp(scores - mx)
    denom = jnp.sum(e, axis=0, keepdims=True)
    attn = e * pl.reciprocal(denom, approx=True)     # (A, m), A == C_out

    # attended[c, b] = sum_l attn[c, l*tb + b] * conv[c, l*tb + b]
    prod = attn * conv                               # (C_out, m) f32
    att = prod[:, 0:tb]
    for li in range(1, l_out):
        att = att + prod[:, li * tb:(li + 1) * tb]   # (C_out, tile_b)

    # AdaptiveMaxPool1d(1) over a length-1 axis and eval-mode Dropout: identity.
    out = jnp.dot(wfc_ref[...], att.astype(wfc_ref.dtype),
                  preferred_element_type=jnp.float32) + bfc_ref[...]
    out_ref[...] = out.astype(out_ref.dtype)


def attention_cnn_forward(x, w_conv, b_conv, w_att, b_att, w_fc, b_fc, *,
                          tile_b=None):
    """x: (B, L, C_in); PyTorch-layout params:
       w_conv (C_out, C_in, k), b_conv (C_out,)
       w_att  (A, C_out),       b_att  (A,)
       w_fc   (n_cls, C_out),   b_fc   (n_cls,)
       returns logits (B, n_cls)."""
    B, L, C_in = x.shape
    C_out, C_in_w, k = w_conv.shape
    assert C_in_w == C_in
    A = w_att.shape[0]
    # forward()'s broadcast multiply (attn.permute * conv_output) needs A == C_out.
    assert A == C_out
    n_cls = w_fc.shape[0]
    assert L - k + 1 >= 1

    if tile_b is None:
        b128 = _round_up(B, 128)
        tile_b = min(1024, b128)
        # Prefer >= 2 grid steps when the batch allows (feeds both v7x TCs).
        if b128 // tile_b < 2 and b128 >= 256:
            tile_b = _round_up(b128 // 2, 128)
    assert tile_b % 128 == 0
    B_pad = _round_up(B, tile_b)
    n_tiles = B_pad // tile_b

    # Channels-first, batch on lanes, pre-split into batch tiles:
    #   x_r[i, ci, l*tile_b + b] = x[i*tile_b + b, l, ci]
    x_pad = x if B_pad == B else jnp.pad(x, ((0, B_pad - B), (0, 0), (0, 0)))
    x_r = (x_pad.astype(jnp.bfloat16)
           .reshape(n_tiles, tile_b, L, C_in)
           .transpose(0, 3, 2, 1)
           .reshape(n_tiles, C_in, L * tile_b))

    # Fused conv + attention weights (W_att @ W_conv folded in f32, then bf16):
    #   rows [0:C_out)       -> conv      (W_conv, bias b_conv)
    #   rows [C_out:C_out+A) -> scores    (W_att@W_conv, bias W_att@b_conv + b_att)
    CA = C_out + A
    wc = w_conv.astype(jnp.float32)                        # (C_out, C_in, k)
    wa = w_att.astype(jnp.float32)                         # (A, C_out)
    w_fold = jnp.einsum('ac,cik->aik', wa, wc)             # (A, C_in, k)
    w_fused = (jnp.concatenate([wc, w_fold], axis=0)       # (CA, C_in, k)
               .transpose(2, 0, 1).astype(jnp.bfloat16))   # (k, CA, C_in)
    b_fused = jnp.concatenate(
        [b_conv.astype(jnp.float32),
         wa @ b_conv.astype(jnp.float32) + b_att.astype(jnp.float32)]
    ).reshape(CA, 1)

    # Classifier head: rows zero-padded to 8 sublanes, batch on lanes.
    n_pad = _round_up(max(n_cls, 1), 8)
    w_fc_p = jnp.zeros((n_pad, C_out), jnp.bfloat16).at[:n_cls].set(
        w_fc.astype(jnp.bfloat16))
    b_fc_p = jnp.zeros((n_pad, 1), jnp.float32).at[:n_cls, 0].set(
        b_fc.astype(jnp.float32))

    out_t = pl.pallas_call(
        _attention_cnn_kernel,
        out_shape=jax.ShapeDtypeStruct((n_pad, B_pad), jnp.float32),
        grid_spec=pltpu.PrefetchScalarGridSpec(
            num_scalar_prefetch=0,
            grid=(n_tiles,),
            in_specs=[
                pl.BlockSpec((None, C_in, L * tile_b), lambda i: (i, 0, 0)),
                pl.BlockSpec((k, CA, C_in), lambda i: (0, 0, 0)),   # fused W (resident)
                pl.BlockSpec((CA, 1), lambda i: (0, 0)),            # fused bias
                pl.BlockSpec((n_pad, C_out), lambda i: (0, 0)),     # fc W
                pl.BlockSpec((n_pad, 1), lambda i: (0, 0)),         # fc b
            ],
            out_specs=pl.BlockSpec((n_pad, tile_b), lambda i: (0, i)),
        ),
        compiler_params=pltpu.CompilerParams(
            dimension_semantics=("parallel",),
            vmem_limit_bytes=32 * 1024 * 1024),
    )(x_r, w_fused, b_fused, w_fc_p, b_fc_p)

    return out_t[:n_cls, :B].T


def _reference(x, w_conv, b_conv, w_att, b_att, w_fc, b_fc):
    """Plain float32 mirror of AttentionCNN.forward (eval mode)."""
    B, L, C_in = x.shape
    C_out, _, k = w_conv.shape
    L_out = L - k + 1
    x = x.astype(jnp.float32)
    conv = jnp.zeros((B, C_out, L_out), jnp.float32) + b_conv[None, :, None]
    for dk in range(k):
        conv = conv + jnp.einsum('bli,oi->bol', x[:, dk:dk + L_out, :],
                                 w_conv[:, :, dk].astype(jnp.float32))
    scores = jnp.einsum('bol,ao->bla', conv, w_att.astype(jnp.float32)) + b_att
    attn = jax.nn.softmax(scores, axis=-1)                          # (B, L_out, A)
    attended = jnp.sum(jnp.transpose(attn, (0, 2, 1)) * conv, axis=2)  # (B, C_out)
    return attended @ w_fc.T.astype(jnp.float32) + b_fc


if __name__ == "__main__":
    # Small shapes consistent with the module: batch=2, seq=16, in_channels=4,
    # out_channels=32, kernel_size=3, attention_dim=32 (== out_channels, as the
    # forward's broadcast multiply requires), 2 output classes.
    B, L, C_in = 2, 16, 4
    C_out, k, A = 32, 3, 32

    key = jax.random.PRNGKey(0)
    ks = jax.random.split(key, 7)
    x = jax.random.normal(ks[0], (B, L, C_in), dtype=jnp.float32)
    w_conv = jax.random.normal(ks[1], (C_out, C_in, k), dtype=jnp.float32) / (C_in * k) ** 0.5
    b_conv = jax.random.normal(ks[2], (C_out,), dtype=jnp.float32) * 0.01
    w_att = jax.random.normal(ks[3], (A, C_out), dtype=jnp.float32) / C_out ** 0.5
    b_att = jax.random.normal(ks[4], (A,), dtype=jnp.float32) * 0.01
    w_fc = jax.random.normal(ks[5], (2, C_out), dtype=jnp.float32) / C_out ** 0.5
    b_fc = jax.random.normal(ks[6], (2,), dtype=jnp.float32) * 0.01

    out = attention_cnn_forward(x, w_conv, b_conv, w_att, b_att, w_fc, b_fc)
    out = jax.block_until_ready(out)

    ref = _reference(x, w_conv, b_conv, w_att, b_att, w_fc, b_fc)
    assert out.shape == (B, 2)
    assert jnp.allclose(out, ref, atol=3e-2, rtol=3e-2), "mismatch vs reference"

    print("KERNEL_OK")
</pallas_src>

<mosaic_0001>
module attributes {stable_mosaic.version = 11 : i64} {
  func.func @_attention_cnn_kernel(%arg0: i32, %arg1: memref<1x4x2048xbf16, #tpu.memory_space<vmem>>, %arg2: memref<3x64x4xbf16, #tpu.memory_space<vmem>>, %arg3: memref<64x1xf32, #tpu.memory_space<vmem>>, %arg4: memref<8x32xbf16, #tpu.memory_space<vmem>>, %arg5: memref<8x1xf32, #tpu.memory_space<vmem>>, %arg6: memref<8x128xf32, #tpu.memory_space<vmem>>) attributes {dimension_semantics = [#tpu.dimension_semantics<parallel>], iteration_bounds = array<i64: 1>, scalar_prefetch = 0 : i64, scratch_operands = 0 : i64, tpu.core_type = #tpu.core_type<tc>, window_params = [{transform_indices = @transform_0, window_bounds = array<i64: 1, 4, 2048>}, {pipeline_mode = #tpu.pipeline_mode<synchronous>, transform_indices = @transform_1, window_bounds = array<i64: 3, 64, 4>}, {pipeline_mode = #tpu.pipeline_mode<synchronous>, transform_indices = @transform_2, window_bounds = array<i64: 64, 1>}, {pipeline_mode = #tpu.pipeline_mode<synchronous>, transform_indices = @transform_3, window_bounds = array<i64: 8, 32>}, {pipeline_mode = #tpu.pipeline_mode<synchronous>, transform_indices = @transform_4, window_bounds = array<i64: 8, 1>}, {transform_indices = @transform_5, window_bounds = array<i64: 8, 128>}]} {
    %c0 = arith.constant 0 : index
    %c0_0 = arith.constant 0 : index
    %c0_1 = arith.constant 0 : index
    %0 = vector.load %arg2[%c0, %c0_0, %c0_1] : memref<3x64x4xbf16, #tpu.memory_space<vmem>>, vector<1x64x4xbf16>
    %1 = vector.shape_cast %0 : vector<1x64x4xbf16> to vector<64x4xbf16>
    %c0_2 = arith.constant 0 : index
    %c0_3 = arith.constant 0 : index
    %c0_4 = arith.constant 0 : index
    %2 = vector.load %arg1[%c0_2, %c0_3, %c0_4] : memref<1x4x2048xbf16, #tpu.memory_space<vmem>>, vector<1x4x1792xbf16>
    %3 = vector.shape_cast %2 : vector<1x4x1792xbf16> to vector<4x1792xbf16>
    %cst = arith.constant dense<0.000000e+00> : vector<64x1792xf32>
    %4 = tpu.matmul %1, %3, %cst {dimension_numbers = #tpu.dot_dimension_numbers<[1], [0], [0], [1], [0, 0, 1, 1], [], []>} : vector<64x4xbf16>, vector<4x1792xbf16>, vector<64x1792xf32> -> vector<64x1792xf32>
    %c1 = arith.constant 1 : index
    %c0_5 = arith.constant 0 : index
    %c0_6 = arith.constant 0 : index
    %5 = vector.load %arg2[%c1, %c0_5, %c0_6] : memref<3x64x4xbf16, #tpu.memory_space<vmem>>, vector<1x64x4xbf16>
    %6 = vector.shape_cast %5 : vector<1x64x4xbf16> to vector<64x4xbf16>
    %c0_7 = arith.constant 0 : index
    %c0_8 = arith.constant 0 : index
    %c128 = arith.constant 128 : index
    %7 = vector.load %arg1[%c0_7, %c0_8, %c128] : memref<1x4x2048xbf16, #tpu.memory_space<vmem>>, vector<1x4x1792xbf16>
    %8 = vector.shape_cast %7 : vector<1x4x1792xbf16> to vector<4x1792xbf16>
    %cst_9 = arith.constant dense<0.000000e+00> : vector<64x1792xf32>
    %9 = tpu.matmul %6, %8, %cst_9 {dimension_numbers = #tpu.dot_dimension_numbers<[1], [0], [0], [1], [0, 0, 1, 1], [], []>} : vector<64x4xbf16>, vector<4x1792xbf16>, vector<64x1792xf32> -> vector<64x1792xf32>
    %10 = arith.addf %4, %9 : vector<64x1792xf32>
    %c2 = arith.constant 2 : index
    %c0_10 = arith.constant 0 : index
    %c0_11 = arith.constant 0 : index
    %11 = vector.load %arg2[%c2, %c0_10, %c0_11] : memref<3x64x4xbf16, #tpu.memory_space<vmem>>, vector<1x64x4xbf16>
    %12 = vector.shape_cast %11 : vector<1x64x4xbf16> to vector<64x4xbf16>
    %c0_12 = arith.constant 0 : index
    %c0_13 = arith.constant 0 : index
    %c256 = arith.constant 256 : index
    %13 = vector.load %arg1[%c0_12, %c0_13, %c256] : memref<1x4x2048xbf16, #tpu.memory_space<vmem>>, vector<1x4x1792xbf16>
    %14 = vector.shape_cast %13 : vector<1x4x1792xbf16> to vector<4x1792xbf16>
    %cst_14 = arith.constant dense<0.000000e+00> : vector<64x1792xf32>
    %15 = tpu.matmul %12, %14, %cst_14 {dimension_numbers = #tpu.dot_dimension_numbers<[1], [0], [0], [1], [0, 0, 1, 1], [], []>} : vector<64x4xbf16>, vector<4x1792xbf16>, vector<64x1792xf32> -> vector<64x1792xf32>
    %16 = arith.addf %10, %15 : vector<64x1792xf32>
    %c0_15 = arith.constant 0 : index
    %c0_16 = arith.constant 0 : index
    %17 = vector.load %arg3[%c0_15, %c0_16] : memref<64x1xf32, #tpu.memory_space<vmem>>, vector<64x1xf32>
    %18 = vector.broadcast %17 : vector<64x1xf32> to vector<64x1792xf32>
    %19 = arith.addf %16, %18 : vector<64x1792xf32>
    %20 = vector.extract_strided_slice %19 {offsets = [0, 0], sizes = [32, 1792], strides = [1, 1]} : vector<64x1792xf32> to vector<32x1792xf32>
    %21 = vector.extract_strided_slice %19 {offsets = [32, 0], sizes = [32, 1792], strides = [1, 1]} : vector<64x1792xf32> to vector<32x1792xf32>
    %cst_17 = arith.constant dense<0xFF800000> : vector<1792xf32>
    %22 = vector.multi_reduction <maximumf>, %21, %cst_17 [0] : vector<32x1792xf32> to vector<1792xf32>
    %23 = vector.shape_cast %22 : vector<1792xf32> to vector<1x1792xf32>
    %24 = vector.broadcast %23 : vector<1x1792xf32> to vector<32x1792xf32>
    %25 = arith.subf %21, %24 : vector<32x1792xf32>
    %26 = math.exp %25 : vector<32x1792xf32>
    %cst_18 = arith.constant dense<0.000000e+00> : vector<1792xf32>
    %27 = vector.multi_reduction <add>, %26, %cst_18 [0] : vector<32x1792xf32> to vector<1792xf32>
    %28 = vector.shape_cast %27 : vector<1792xf32> to vector<1x1792xf32>
    %29 = tpu.reciprocal %28 {approx = true} : vector<1x1792xf32> -> vector<1x1792xf32>
    %30 = vector.broadcast %29 : vector<1x1792xf32> to vector<32x1792xf32>
    %31 = arith.mulf %26, %30 : vector<32x1792xf32>
    %32 = arith.mulf %31, %20 : vector<32x1792xf32>
    %33 = vector.extract_strided_slice %32 {offsets = [0, 0], sizes = [32, 128], strides = [1, 1]} : vector<32x1792xf32> to vector<32x128xf32>
    %34 = vector.extract_strided_slice %32 {offsets = [0, 128], sizes = [32, 128], strides = [1, 1]} : vector<32x1792xf32> to vector<32x128xf32>
    %35 = arith.addf %33, %34 : vector<32x128xf32>
    %36 = vector.extract_strided_slice %32 {offsets = [0, 256], sizes = [32, 128], strides = [1, 1]} : vector<32x1792xf32> to vector<32x128xf32>
    %37 = arith.addf %35, %36 : vector<32x128xf32>
    %38 = vector.extract_strided_slice %32 {offsets = [0, 384], sizes = [32, 128], strides = [1, 1]} : vector<32x1792xf32> to vector<32x128xf32>
    %39 = arith.addf %37, %38 : vector<32x128xf32>
    %40 = vector.extract_strided_slice %32 {offsets = [0, 512], sizes = [32, 128], strides = [1, 1]} : vector<32x1792xf32> to vector<32x128xf32>
    %41 = arith.addf %39, %40 : vector<32x128xf32>
    %42 = vector.extract_strided_slice %32 {offsets = [0, 640], sizes = [32, 128], strides = [1, 1]} : vector<32x1792xf32> to vector<32x128xf32>
    %43 = arith.addf %41, %42 : vector<32x128xf32>
    %44 = vector.extract_strided_slice %32 {offsets = [0, 768], sizes = [32, 128], strides = [1, 1]} : vector<32x1792xf32> to vector<32x128xf32>
    %45 = arith.addf %43, %44 : vector<32x128xf32>
    %46 = vector.extract_strided_slice %32 {offsets = [0, 896], sizes = [32, 128], strides = [1, 1]} : vector<32x1792xf32> to vector<32x128xf32>
    %47 = arith.addf %45, %46 : vector<32x128xf32>
    %48 = vector.extract_strided_slice %32 {offsets = [0, 1024], sizes = [32, 128], strides = [1, 1]} : vector<32x1792xf32> to vector<32x128xf32>
    %49 = arith.addf %47, %48 : vector<32x128xf32>
    %50 = vector.extract_strided_slice %32 {offsets = [0, 1152], sizes = [32, 128], strides = [1, 1]} : vector<32x1792xf32> to vector<32x128xf32>
    %51 = arith.addf %49, %50 : vector<32x128xf32>
    %52 = vector.extract_strided_slice %32 {offsets = [0, 1280], sizes = [32, 128], strides = [1, 1]} : vector<32x1792xf32> to vector<32x128xf32>
    %53 = arith.addf %51, %52 : vector<32x128xf32>
    %54 = vector.extract_strided_slice %32 {offsets = [0, 1408], sizes = [32, 128], strides = [1, 1]} : vector<32x1792xf32> to vector<32x128xf32>
    %55 = arith.addf %53, %54 : vector<32x128xf32>
    %56 = vector.extract_strided_slice %32 {offsets = [0, 1536], sizes = [32, 128], strides = [1, 1]} : vector<32x1792xf32> to vector<32x128xf32>
    %57 = arith.addf %55, %56 : vector<32x128xf32>
    %58 = vector.extract_strided_slice %32 {offsets = [0, 1664], sizes = [32, 128], strides = [1, 1]} : vector<32x1792xf32> to vector<32x128xf32>
    %59 = arith.addf %57, %58 : vector<32x128xf32>
    %c0_19 = arith.constant 0 : index
    %c0_20 = arith.constant 0 : index
    %60 = vector.load %arg4[%c0_19, %c0_20] : memref<8x32xbf16, #tpu.memory_space<vmem>>, vector<8x32xbf16>
    %61 = arith.truncf %59 : vector<32x128xf32> to vector<32x128xbf16>
    %cst_21 = arith.constant dense<0.000000e+00> : vector<8x128xf32>
    %62 = tpu.matmul %60, %61, %cst_21 {dimension_numbers = #tpu.dot_dimension_numbers<[1], [0], [0], [1], [0, 0, 1, 1], [], []>} : vector<8x32xbf16>, vector<32x128xbf16>, vector<8x128xf32> -> vector<8x128xf32>
    %c0_22 = arith.constant 0 : index
    %c0_23 = arith.constant 0 : index
    %63 = vector.load %arg5[%c0_22, %c0_23] : memref<8x1xf32, #tpu.memory_space<vmem>>, vector<8x1xf32>
    %64 = vector.broadcast %63 : vector<8x1xf32> to vector<8x128xf32>
    %65 = arith.addf %62, %64 : vector<8x128xf32>
    %c0_24 = arith.constant 0 : index
    %c0_25 = arith.constant 0 : index
    %66 = vector.load %arg6[%c0_24, %c0_25] : memref<8x128xf32, #tpu.memory_space<vmem>>, vector<8x128xf32>
    tpu.vector_store %arg6[%c0_24, %c0_25], %65 {strides = array<i32>} : memref<8x128xf32, #tpu.memory_space<vmem>>, vector<8x128xf32>,
    return
  }
  func.func @transform_0(%arg0: i32) -> (i32, i32, i32) {
    %c0_i32 = arith.constant 0 : i32
    %c0_i32_0 = arith.constant 0 : i32
    %c0_i32_1 = arith.constant 0 : i32
    return %arg0, %c0_i32, %c0_i32_0 : i32, i32, i32
  }
  func.func @transform_1(%arg0: i32) -> (i32, i32, i32) {
    %c0_i32 = arith.constant 0 : i32
    %c0_i32_0 = arith.constant 0 : i32
    %c0_i32_1 = arith.constant 0 : i32
    %c0_i32_2 = arith.constant 0 : i32
    return %c0_i32, %c0_i32_0, %c0_i32_1 : i32, i32, i32
  }
  func.func @transform_2(%arg0: i32) -> (i32, i32) {
    %c0_i32 = arith.constant 0 : i32
    %c0_i32_0 = arith.constant 0 : i32
    %c0_i32_1 = arith.constant 0 : i32
    return %c0_i32, %c0_i32_0 : i32, i32
  }
  func.func @transform_3(%arg0: i32) -> (i32, i32) {
    %c0_i32 = arith.constant 0 : i32
    %c0_i32_0 = arith.constant 0 : i32
    %c0_i32_1 = arith.constant 0 : i32
    return %c0_i32, %c0_i32_0 : i32, i32
  }
  func.func @transform_4(%arg0: i32) -> (i32, i32) {
    %c0_i32 = arith.constant 0 : i32
    %c0_i32_0 = arith.constant 0 : i32
    %c0_i32_1 = arith.constant 0 : i32
    return %c0_i32, %c0_i32_0 : i32, i32
  }
  func.func @transform_5(%arg0: i32) -> (i32, i32) {
    %c0_i32 = arith.constant 0 : i32
    %c0_i32_0 = arith.constant 0 : i32
    return %c0_i32, %arg0 : i32, i32
  }
}

</mosaic_0001>

<llo_original>
// kernel: tpu_custom_call.1
$region0: #{tpu_custom_call.1}
  #allocation0 [shape = 'u32[]', space=smem, size = 0x4, offset = 0x4, fixed_abs, tag = 'smem constant byte address 0x4 - core index']
  #allocation1 [shape = 'u32[144,128]{1,0:T(1,128)}', space=vmem, size = 0x12000, scoped, tag = 'internal scratch']
  %s0 = inlined_call_operand.vmem [shape: bf16[1,4,2048], index: 0, kind: input, shape index: {}]
  %s1 = inlined_call_operand.vmem [shape: bf16[3,64,4], index: 1, kind: input, shape index: {}]
  %s2 = inlined_call_operand.vmem [shape: f32[64,1], index: 2, kind: input, shape index: {}]
  %s3 = inlined_call_operand.vmem [shape: bf16[8,32], index: 3, kind: input, shape index: {}]
  %s4 = inlined_call_operand.vmem [shape: f32[8,1], index: 4, kind: input, shape index: {}]
  %s5 = inlined_call_operand.hbm [shape: f32[8,128], index: 5, kind: output, shape index: {}]
  %s6 = sld [smem:[#allocation0]]
  $region30: #{tpu_custom_call.1} parent=0
    _
  %s8 = ssub.s32 1, %s6
  %s9 = scalar_select 0, %s8, %s6
  $region1: #{tpu_custom_call.1} parent=0
    #allocation2 [shape = 'u8[4096]{0}', space=vmem, size = 0x1000, scoped, tag = 'output window, operand 0, single buffered']
    #allocation3 [shape = 's32[1]{0}', space=sflag, size = 0x4, scoped, tag = 'scoped memory for tpu_custom_call.1']
    %10 = vsyncpa [#allocation3], 0
    // Predicated region
    $region2: #{tpu_custom_call.1} parent=1 // pred_check
      _
    $region3: #{tpu_custom_call.1} parent=1 // pred_check_branch
      %12 = sbr.rel (0) target = $region5
    $region4: #{tpu_custom_call.1} parent=1 // pred_region
      _
    $region5: #{tpu_custom_call.1} parent=1 // pred_fallthru
      _
    // Predicated region
    $region6: #{tpu_custom_call.1} parent=1 // pred_check
      _
    $region7: #{tpu_custom_call.1} parent=1 // pred_check_branch
      %14 = sbr.rel (0) target = $region9
    $region8: #{tpu_custom_call.1} parent=1 // pred_region
      _
    $region9: #{tpu_custom_call.1} parent=1 // pred_fallthru
      _
    // Predicated region
    $region10: #{tpu_custom_call.1} parent=1 // pred_check
      _
    $region11: #{tpu_custom_call.1} parent=1 // pred_check_branch
      %16 = sbr.rel (0) target = $region13
    $region12: #{tpu_custom_call.1} parent=1 // pred_region
      _
    $region13: #{tpu_custom_call.1} parent=1 // pred_fallthru
      _
    // Predicated region
    $region14: #{tpu_custom_call.1} parent=1 // pred_check
      _
    $region15: #{tpu_custom_call.1} parent=1 // pred_check_branch
      %18 = sbr.rel (0) target = $region17
    $region16: #{tpu_custom_call.1} parent=1 // pred_region
      _
    $region17: #{tpu_custom_call.1} parent=1 // pred_fallthru
      _
    // Predicated region
    $region18: #{tpu_custom_call.1} parent=1 // pred_check
      _
    $region19: #{tpu_custom_call.1} parent=1 // pred_check_branch
      %20 = sbr.rel (0) target = $region21
    $region20: #{tpu_custom_call.1} parent=1 // pred_region
      _
    $region21: #{tpu_custom_call.1} parent=1 // pred_fallthru
      _
    %v22 = vld [vmem:[%s1] sm:$0xf]
    %v23 = vld [vmem:[%s1 + $0x4] sm:$0xf]
    %v24 = vld [vmem:[%s1 + $0x8] sm:$0xf]
    %v25 = vld [vmem:[%s1 + $0xc] sm:$0xf]
    %v26 = vld [vmem:[%s1 + $0x10] sm:$0xf]
    %v27 = vld [vmem:[%s1 + $0x14] sm:$0xf]
    %v28 = vld [vmem:[%s1 + $0x18] sm:$0xf]
    %v29 = vld [vmem:[%s1 + $0x1c] sm:$0xf]
    %v30 = vld [vmem:[%s0] sm:$0xff]
    %v31 = vld [vmem:[%s0 + $0x8] sm:$0xff]
    %v32 = vld [vmem:[%s0 + $0x10] sm:$0xff]
    %v33 = vld [vmem:[%s0 + $0x18] sm:$0xf]
    %s34 = scalar_lea.vmem %s1, 32
    %v35 = vld [vmem:[%s34] sm:$0xf]
    %v36 = vld [vmem:[%s34 + $0x4] sm:$0xf]
    %v37 = vld [vmem:[%s34 + $0x8] sm:$0xf]
    %v38 = vld [vmem:[%s34 + $0xc] sm:$0xf]
    %v39 = vld [vmem:[%s34 + $0x10] sm:$0xf]
    %v40 = vld [vmem:[%s34 + $0x14] sm:$0xf]
    %v41 = vld [vmem:[%s34 + $0x18] sm:$0xf]
    %v42 = vld [vmem:[%s34 + $0x1c] sm:$0xf]
    %v43 = vld [vmem:[%s0 + $0x2] sm:$0xff]
    %v44 = vld [vmem:[%s0 + $0xa] sm:$0xff]
    %v45 = vld [vmem:[%s0 + $0x12] sm:$0xff]
    %v46 = vld [vmem:[%s0 + $0x1a] sm:$0xf]
    %v55 = vunpack.c.l.b16 %v35
    %v56 = vunpack.c.l.b16 %v36
    %v57 = vunpack.c.l.b16 %v37
    %v58 = vunpack.c.l.b16 %v38
    %v59 = vunpack.c.l.b16 %v39
    %v60 = vunpack.c.l.b16 %v40
    %v61 = vunpack.c.l.b16 %v41
    %v62 = vunpack.c.l.b16 %v42
    %v63 = vpack.c.b16 %v56, %v55
    %v64 = vpack.c.b16 %v58, %v57
    %v65 = vpack.c.b16 %v60, %v59
    %v66 = vpack.c.b16 %v62, %v61
    %v71 = vcombine.high %v43, %v43
    %v73 = vunpack.c.l.s4 1983009808
    %v74 = vunpack.c.0.s8 %v73
    %v75 = vlaneseq
    %v76 = vshrl.u32 %v75, 7
    %v77 = vsub.s32 %v74, %v76
    %v78 = vrot.slane %v43, %v77
    %v80 = vunpack.c.l.s4 1983009808
    %v81 = vunpack.c.0.s8 %v80
    %v82 = vlaneseq
    %v83 = vshrl.u32 %v82, 7
    %v84 = vsub.s32 %v81, %v83
    %v85 = vrot.slane %v71, %v84
    %v86 = vcombine.high %v78, %v78
    %v87 = vcombine.high %v85, %v85
    %v88 = vcombine.high %v44, %v44
    %v90 = vunpack.c.l.s4 1983009808
    %v91 = vunpack.c.0.s8 %v90
    %v92 = vlaneseq
    %v93 = vshrl.u32 %v92, 7
    %v94 = vsub.s32 %v91, %v93
    %v95 = vrot.slane %v44, %v94
    %v97 = vunpack.c.l.s4 1983009808
    %v98 = vunpack.c.0.s8 %v97
    %v99 = vlaneseq
    %v100 = vshrl.u32 %v99, 7
    %v101 = vsub.s32 %v98, %v100
    %v102 = vrot.slane %v88, %v101
    %v103 = vcombine.high %v95, %v95
    %v104 = vcombine.high %v102, %v102
    %v105 = vcombine.high %v45, %v45
    %v107 = vunpack.c.l.s4 1983009808
    %v108 = vunpack.c.0.s8 %v107
    %v109 = vlaneseq
    %v110 = vshrl.u32 %v109, 7
    %v111 = vsub.s32 %v108, %v110
    %v112 = vrot.slane %v45, %v111
    %v114 = vunpack.c.l.s4 1983009808
    %v115 = vunpack.c.0.s8 %v114
    %v116 = vlaneseq
    %v117 = vshrl.u32 %v116, 7
    %v118 = vsub.s32 %v115, %v117
    %v119 = vrot.slane %v105, %v118
    %v120 = vcombine.high %v112, %v112
    %v121 = vcombine.high %v119, %v119
    %v123 = vunpack.c.l.s4 1983009808
    %v124 = vunpack.c.0.s8 %v123
    %v125 = vlaneseq
    %v126 = vshrl.u32 %v125, 7
    %v127 = vsub.s32 %v124, %v126
    %v128 = vrot.slane %v46, %v127
    %v129 = vcombine.high %v128, %v128
    %vm130 = vcmask 31744
    %v132 = vsel %vm130, %v63, 0
    %v135 = vsel %vm130, %v64, 0
    %v138 = vsel %vm130, %v65, 0
    %v141 = vsel %vm130, %v66, 0
    %vm143 = vcmask 1041408
    %v145 = vsel %vm143, %v78, 0
    %v148 = vsel %vm143, %v86, 0
    %v151 = vsel %vm143, %v85, 0
    %v154 = vsel %vm143, %v87, 0
    %v157 = vsel %vm143, %v95, 0
    %v160 = vsel %vm143, %v103, 0
    %v163 = vsel %vm143, %v102, 0
    %v166 = vsel %vm143, %v104, 0
    %v169 = vsel %vm143, %v112, 0
    %v172 = vsel %vm143, %v120, 0
    %v175 = vsel %vm143, %v119, 0
    %v178 = vsel %vm143, %v121, 0
    %v181 = vsel %vm143, %v128, 0
    %v184 = vsel %vm143, %v129, 0
    %186 = vmatprep.subr.bf16.mxu0 %v148
    %187 = vmatpush1.bf16.msra.mxu0 %v145
    %188 = vmatprep.subr.bf16.mxu0 0
    %189 = vmatpush1.bf16.msra.mxu0 0
    %190 = vmatprep.subr.bf16.mxu0 0
    %191 = vmatpush1.bf16.msra.mxu0 0
    %192 = vmatprep.subr.bf16.mxu0 0
    %193 = vmatpush1.bf16.msra.mxu0 0
    %194 = vmatprep.subr.bf16.mxu0 0
    %195 = vmatpush1.bf16.msra.mxu0 0
    %196 = vmatprep.subr.bf16.mxu0 0
    %197 = vmatpush1.bf16.msra.mxu0 0
    %198 = vmatprep.subr.bf16.mxu0 0
    %199 = vmatpush1.bf16.msra.mxu0 0
    %200 = vmatprep.subr.bf16.mxu0 0
    %201 = vmatpush1.bf16.msra.mxu0 0
    %202 = vmatprep.subr.bf16.mxu0 0
    %203 = vmatpush1.bf16.msra.mxu0 0
    %204 = vmatprep.subr.bf16.mxu0 0
    %205 = vmatpush1.bf16.msra.mxu0 0
    %206 = vmatprep.subr.bf16.mxu0 0
    %207 = vmatpush1.bf16.msra.mxu0 0
    %208 = vmatprep.subr.bf16.mxu0 0
    %209 = vmatpush1.bf16.msra.mxu0 0
    %210 = vmatprep.subr.bf16.mxu0 0
    %211 = vmatpush1.bf16.msra.mxu0 0
    %212 = vmatprep.subr.bf16.mxu0 0
    %213 = vmatpush1.bf16.msra.mxu0 0
    %214 = vmatprep.subr.bf16.mxu0 0
    %215 = vmatpush1.bf16.msra.mxu0 0
    %216 = vmatprep.subr.bf16.mxu0 0
    %217 = vmatpush1.bf16.msra.mxu0 0
    %218 = vmatprep.mubr.bf16.mxu0 0
    %219 = vmatmul.mubr.bf16.gmra.mrb[0].mxu0 %v132
    %v220 = vpop.f32.mrb[0].mxu0
    %v221 = vadd.f32 0.0, %v220
    %v222 = vpop.f32.mrb[0].mxu0
    %v223 = vadd.f32 0.0, %v222
    %v224 = vpop.f32.mrb[0].mxu0
    %v225 = vadd.f32 0.0, %v224
    %v226 = vpop.f32.mrb[0].mxu0
    %v227 = vadd.f32 0.0, %v226
    %228 = vmatprep.mubr.bf16.mxu0 0
    %229 = vmatmul.mubr.bf16.gmra.mrb[0].mxu0 %v135
    %v230 = vpop.f32.mrb[0].mxu0
    %v231 = vadd.f32 0.0, %v230
    %v232 = vpop.f32.mrb[0].mxu0
    %v233 = vadd.f32 0.0, %v232
    %v234 = vpop.f32.mrb[0].mxu0
    %v235 = vadd.f32 0.0, %v234
    %v236 = vpop.f32.mrb[0].mxu0
    %v237 = vadd.f32 0.0, %v236
    %238 = vmatprep.mubr.bf16.mxu0 0
    %239 = vmatmul.mubr.bf16.gmra.mrb[0].mxu0 %v138
    %v240 = vpop.f32.mrb[0].mxu0
    %v241 = vadd.f32 0.0, %v240
    %v242 = vpop.f32.mrb[0].mxu0
    %v243 = vadd.f32 0.0, %v242
    %v244 = vpop.f32.mrb[0].mxu0
    %v245 = vadd.f32 0.0, %v244
    %v246 = vpop.f32.mrb[0].mxu0
    %v247 = vadd.f32 0.0, %v246
    %248 = vmatprep.mubr.bf16.mxu0 0
    %249 = vmatmul.mubr.bf16.gmra.mrb[0].mxu0 %v141
    %v250 = vpop.f32.mrb[0].mxu0
    %v251 = vadd.f32 0.0, %v250
    %v252 = vpop.f32.mrb[0].mxu0
    %v253 = vadd.f32 0.0, %v252
    %v254 = vpop.f32.mrb[0].mxu0
    %v255 = vadd.f32 0.0, %v254
    %v256 = vpop.f32.mrb[0].mxu0
    %v257 = vadd.f32 0.0, %v256
    %258 = vdwg.mxu0
    %259 = vmatprep.subr.bf16.mxu0 %v154
    %260 = vmatpush1.bf16.msra.mxu0 %v151
    %261 = vmatprep.subr.bf16.mxu0 0
    %262 = vmatpush1.bf16.msra.mxu0 0
    %263 = vmatprep.subr.bf16.mxu0 0
    %264 = vmatpush1.bf16.msra.mxu0 0
    %265 = vmatprep.subr.bf16.mxu0 0
    %266 = vmatpush1.bf16.msra.mxu0 0
    %267 = vmatprep.subr.bf16.mxu0 0
    %268 = vmatpush1.bf16.msra.mxu0 0
    %269 = vmatprep.subr.bf16.mxu0 0
    %270 = vmatpush1.bf16.msra.mxu0 0
    %271 = vmatprep.subr.bf16.mxu0 0
    %272 = vmatpush1.bf16.msra.mxu0 0
    %273 = vmatprep.subr.bf16.mxu0 0
    %274 = vmatpush1.bf16.msra.mxu0 0
    %275 = vmatprep.subr.bf16.mxu0 0
    %276 = vmatpush1.bf16.msra.mxu0 0
    %277 = vmatprep.subr.bf16.mxu0 0
    %278 = vmatpush1.bf16.msra.mxu0 0
    %279 = vmatprep.subr.bf16.mxu0 0
    %280 = vmatpush1.bf16.msra.mxu0 0
    %281 = vmatprep.subr.bf16.mxu0 0
    %282 = vmatpush1.bf16.msra.mxu0 0
    %283 = vmatprep.subr.bf16.mxu0 0
    %284 = vmatpush1.bf16.msra.mxu0 0
    %285 = vmatprep.subr.bf16.mxu0 0
    %286 = vmatpush1.bf16.msra.mxu0 0
    %287 = vmatprep.subr.bf16.mxu0 0
    %288 = vmatpush1.bf16.msra.mxu0 0
    %289 = vmatprep.subr.bf16.mxu0 0
    %290 = vmatpush1.bf16.msra.mxu0 0
    %291 = vmatprep.mubr.bf16.mxu0 0
    %292 = vmatmul.mubr.bf16.gmra.mrb[0].mxu0 %v132
    %v293 = vpop.f32.mrb[0].mxu0
    %v294 = vadd.f32 0.0, %v293
    %v295 = vpop.f32.mrb[0].mxu0
    %v296 = vadd.f32 0.0, %v295
    %v297 = vpop.f32.mrb[0].mxu0
    %v298 = vadd.f32 0.0, %v297
    %v299 = vpop.f32.mrb[0].mxu0
    %v300 = vadd.f32 0.0, %v299
    %301 = vmatprep.mubr.bf16.mxu0 0
    %302 = vmatmul.mubr.bf16.gmra.mrb[0].mxu0 %v135
    %v303 = vpop.f32.mrb[0].mxu0
    %v304 = vadd.f32 0.0, %v303
    %v305 = vpop.f32.mrb[0].mxu0
    %v306 = vadd.f32 0.0, %v305
    %v307 = vpop.f32.mrb[0].mxu0
    %v308 = vadd.f32 0.0, %v307
    %v309 = vpop.f32.mrb[0].mxu0
    %v310 = vadd.f32 0.0, %v309
    %311 = vmatprep.mubr.bf16.mxu0 0
    %312 = vmatmul.mubr.bf16.gmra.mrb[0].mxu0 %v138
    %v313 = vpop.f32.mrb[0].mxu0
    %v314 = vadd.f32 0.0, %v313
    %v315 = vpop.f32.mrb[0].mxu0
    %v316 = vadd.f32 0.0, %v315
    %v317 = vpop.f32.mrb[0].mxu0
    %v318 = vadd.f32 0.0, %v317
    %v319 = vpop.f32.mrb[0].mxu0
    %v320 = vadd.f32 0.0, %v319
    %321 = vmatprep.mubr.bf16.mxu0 0
    %322 = vmatmul.mubr.bf16.gmra.mrb[0].mxu0 %v141
    %v323 = vpop.f32.mrb[0].mxu0
    %v324 = vadd.f32 0.0, %v323
    %v325 = vpop.f32.mrb[0].mxu0
    %v326 = vadd.f32 0.0, %v325
    %v327 = vpop.f32.mrb[0].mxu0
    %v328 = vadd.f32 0.0, %v327
    %v329 = vpop.f32.mrb[0].mxu0
    %v330 = vadd.f32 0.0, %v329
    %331 = vdwg.mxu0
    %332 = vmatprep.subr.bf16.mxu0 %v160
    %333 = vmatpush1.bf16.msra.mxu0 %v157
    %334 = vmatprep.subr.bf16.mxu0 0
    %335 = vmatpush1.bf16.msra.mxu0 0
    %336 = vmatprep.subr.bf16.mxu0 0
    %337 = vmatpush1.bf16.msra.mxu0 0
    %338 = vmatprep.subr.bf16.mxu0 0
    %339 = vmatpush1.bf16.msra.mxu0 0
    %340 = vmatprep.subr.bf16.mxu0 0
    %341 = vmatpush1.bf16.msra.mxu0 0
    %342 = vmatprep.subr.bf16.mxu0 0
    %343 = vmatpush1.bf16.msra.mxu0 0
    %344 = vmatprep.subr.bf16.mxu0 0
    %345 = vmatpush1.bf16.msra.mxu0 0
    %346 = vmatprep.subr.bf16.mxu0 0
    %347 = vmatpush1.bf16.msra.mxu0 0
    %348 = vmatprep.subr.bf16.mxu0 0
    %349 = vmatpush1.bf16.msra.mxu0 0
    %350 = vmatprep.subr.bf16.mxu0 0
    %351 = vmatpush1.bf16.msra.mxu0 0
    %352 = vmatprep.subr.bf16.mxu0 0
    %353 = vmatpush1.bf16.msra.mxu0 0
    %354 = vmatprep.subr.bf16.mxu0 0
    %355 = vmatpush1.bf16.msra.mxu0 0
    %356 = vmatprep.subr.bf16.mxu0 0
    %357 = vmatpush1.bf16.msra.mxu0 0
    %358 = vmatprep.subr.bf16.mxu0 0
    %359 = vmatpush1.bf16.msra.mxu0 0
    %360 = vmatprep.subr.bf16.mxu0 0
    %361 = vmatpush1.bf16.msra.mxu0 0
    %362 = vmatprep.subr.bf16.mxu0 0
    %363 = vmatpush1.bf16.msra.mxu0 0
    %364 = vmatprep.mubr.bf16.mxu0 0
    %365 = vmatmul.mubr.bf16.gmra.mrb[0].mxu0 %v132
    %v366 = vpop.f32.mrb[0].mxu0
    %v367 = vadd.f32 0.0, %v366
    %v368 = vpop.f32.mrb[0].mxu0
    %v369 = vadd.f32 0.0, %v368
    %v370 = vpop.f32.mrb[0].mxu0
    %v371 = vadd.f32 0.0, %v370
    %v372 = vpop.f32.mrb[0].mxu0
    %v373 = vadd.f32 0.0, %v372
    %374 = vmatprep.mubr.bf16.mxu0 0
    %375 = vmatmul.mubr.bf16.gmra.mrb[0].mxu0 %v135
    %v376 = vpop.f32.mrb[0].mxu0
    %v377 = vadd.f32 0.0, %v376
    %v378 = vpop.f32.mrb[0].mxu0
    %v379 = vadd.f32 0.0, %v378
    %v380 = vpop.f32.mrb[0].mxu0
    %v381 = vadd.f32 0.0, %v380
    %v382 = vpop.f32.mrb[0].mxu0
    %v383 = vadd.f32 0.0, %v382
    %384 = vmatprep.mubr.bf16.mxu0 0
    %385 = vmatmul.mubr.bf16.gmra.mrb[0].mxu0 %v138
    %v386 = vpop.f32.mrb[0].mxu0
    %v387 = vadd.f32 0.0, %v386
    %v388 = vpop.f32.mrb[0].mxu0
    %v389 = vadd.f32 0.0, %v388
    %v390 = vpop.f32.mrb[0].mxu0
    %v391 = vadd.f32 0.0, %v390
    %v392 = vpop.f32.mrb[0].mxu0
    %v393 = vadd.f32 0.0, %v392
    %394 = vmatprep.mubr.bf16.mxu0 0
    %395 = vmatmul.mubr.bf16.gmra.mrb[0].mxu0 %v141
    %v396 = vpop.f32.mrb[0].mxu0
    %v397 = vadd.f32 0.0, %v396
    %v398 = vpop.f32.mrb[0].mxu0
    %v399 = vadd.f32 0.0, %v398
    %v400 = vpop.f32.mrb[0].mxu0
    %v401 = vadd.f32 0.0, %v400
    %v402 = vpop.f32.mrb[0].mxu0
    %v403 = vadd.f32 0.0, %v402
    %404 = vdwg.mxu0
    %405 = vmatprep.subr.bf16.mxu0 %v166
    %406 = vmatpush1.bf16.msra.mxu0 %v163
    %407 = vmatprep.subr.bf16.mxu0 0
    %408 = vmatpush1.bf16.msra.mxu0 0
    %409 = vmatprep.subr.bf16.mxu0 0
    %410 = vmatpush1.bf16.msra.mxu0 0
    %411 = vmatprep.subr.bf16.mxu0 0
    %412 = vmatpush1.bf16.msra.mxu0 0
    %413 = vmatprep.subr.bf16.mxu0 0
    %414 = vmatpush1.bf16.msra.mxu0 0
    %415 = vmatprep.subr.bf16.mxu0 0
    %416 = vmatpush1.bf16.msra.mxu0 0
    %417 = vmatprep.subr.bf16.mxu0 0
    %418 = vmatpush1.bf16.msra.mxu0 0
    %419 = vmatprep.subr.bf16.mxu0 0
    %420 = vmatpush1.bf16.msra.mxu0 0
    %421 = vmatprep.subr.bf16.mxu0 0
    %422 = vmatpush1.bf16.msra.mxu0 0
    %423 = vmatprep.subr.bf16.mxu0 0
    %424 = vmatpush1.bf16.msra.mxu0 0
    %425 = vmatprep.subr.bf16.mxu0 0
    %426 = vmatpush1.bf16.msra.mxu0 0
    %427 = vmatprep.subr.bf16.mxu0 0
    %428 = vmatpush1.bf16.msra.mxu0 0
    %429 = vmatprep.subr.bf16.mxu0 0
    %430 = vmatpush1.bf16.msra.mxu0 0
    %431 = vmatprep.subr.bf16.mxu0 0
    %432 = vmatpush1.bf16.msra.mxu0 0
    %433 = vmatprep.subr.bf16.mxu0 0
    %434 = vmatpush1.bf16.msra.mxu0 0
    %435 = vmatprep.subr.bf16.mxu0 0
    %436 = vmatpush1.bf16.msra.mxu0 0
    %437 = vmatprep.mubr.bf16.mxu0 0
    %438 = vmatmul.mubr.bf16.gmra.mrb[0].mxu0 %v132
    %v439 = vpop.f32.mrb[0].mxu0
    %v440 = vadd.f32 0.0, %v439
    %v441 = vpop.f32.mrb[0].mxu0
    %v442 = vadd.f32 0.0, %v441
    %v443 = vpop.f32.mrb[0].mxu0
    %v444 = vadd.f32 0.0, %v443
    %v445 = vpop.f32.mrb[0].mxu0
    %v446 = vadd.f32 0.0, %v445
    %447 = vmatprep.mubr.bf16.mxu0 0
    %448 = vmatmul.mubr.bf16.gmra.mrb[0].mxu0 %v135
    %v449 = vpop.f32.mrb[0].mxu0
    %v450 = vadd.f32 0.0, %v449
    %v451 = vpop.f32.mrb[0].mxu0
    %v452 = vadd.f32 0.0, %v451
    %v453 = vpop.f32.mrb[0].mxu0
    %v454 = vadd.f32 0.0, %v453
    %v455 = vpop.f32.mrb[0].mxu0
    %v456 = vadd.f32 0.0, %v455
    %457 = vmatprep.mubr.bf16.mxu0 0
    %458 = vmatmul.mubr.bf16.gmra.mrb[0].mxu0 %v138
    %v459 = vpop.f32.mrb[0].mxu0
    %v460 = vadd.f32 0.0, %v459
    %v461 = vpop.f32.mrb[0].mxu0
    %v462 = vadd.f32 0.0, %v461
    %v463 = vpop.f32.mrb[0].mxu0
    %v464 = vadd.f32 0.0, %v463
    %v465 = vpop.f32.mrb[0].mxu0
    %v466 = vadd.f32 0.0, %v465
    %467 = vmatprep.mubr.bf16.mxu0 0
    %468 = vmatmul.mubr.bf16.gmra.mrb[0].mxu0 %v141
    %v469 = vpop.f32.mrb[0].mxu0
    %v470 = vadd.f32 0.0, %v469
    %v471 = vpop.f32.mrb[0].mxu0
    %v472 = vadd.f32 0.0, %v471
    %v473 = vpop.f32.mrb[0].mxu0
    %v474 = vadd.f32 0.0, %v473
    %v475 = vpop.f32.mrb[0].mxu0
    %v476 = vadd.f32 0.0, %v475
    %477 = vdwg.mxu0
    %478 = vmatprep.subr.bf16.mxu0 %v172
    %479 = vmatpush1.bf16.msra.mxu0 %v169
    %480 = vmatprep.subr.bf16.mxu0 0
    %481 = vmatpush1.bf16.msra.mxu0 0
    %482 = vmatprep.subr.bf16.mxu0 0
    %483 = vmatpush1.bf16.msra.mxu0 0
    %484 = vmatprep.subr.bf16.mxu0 0
    %485 = vmatpush1.bf16.msra.mxu0 0
    %486 = vmatprep.subr.bf16.mxu0 0
    %487 = vmatpush1.bf16.msra.mxu0 0
    %488 = vmatprep.subr.bf16.mxu0 0
    %489 = vmatpush1.bf16.msra.mxu0 0
    %490 = vmatprep.subr.bf16.mxu0 0
    %491 = vmatpush1.bf16.msra.mxu0 0
    %492 = vmatprep.subr.bf16.mxu0 0
    %493 = vmatpush1.bf16.msra.mxu0 0
    %494 = vmatprep.subr.bf16.mxu0 0
    %495 = vmatpush1.bf16.msra.mxu0 0
    %496 = vmatprep.subr.bf16.mxu0 0
    %497 = vmatpush1.bf16.msra.mxu0 0
    %498 = vmatprep.subr.bf16.mxu0 0
    %499 = vmatpush1.bf16.msra.mxu0 0
    %500 = vmatprep.subr.bf16.mxu0 0
    %501 = vmatpush1.bf16.msra.mxu0 0
    %502 = vmatprep.subr.bf16.mxu0 0
    %503 = vmatpush1.bf16.msra.mxu0 0
    %504 = vmatprep.subr.bf16.mxu0 0
    %505 = vmatpush1.bf16.msra.mxu0 0
    %506 = vmatprep.subr.bf16.mxu0 0
    %507 = vmatpush1.bf16.msra.mxu0 0
    %508 = vmatprep.subr.bf16.mxu0 0
    %509 = vmatpush1.bf16.msra.mxu0 0
    %510 = vmatprep.mubr.bf16.mxu0 0
    %511 = vmatmul.mubr.bf16.gmra.mrb[0].mxu0 %v132
    %v512 = vpop.f32.mrb[0].mxu0
    %v513 = vadd.f32 0.0, %v512
    %v514 = vpop.f32.mrb[0].mxu0
    %v515 = vadd.f32 0.0, %v514
    %v516 = vpop.f32.mrb[0].mxu0
    %v517 = vadd.f32 0.0, %v516
    %v518 = vpop.f32.mrb[0].mxu0
    %v519 = vadd.f32 0.0, %v518
    %520 = vmatprep.mubr.bf16.mxu0 0
    %521 = vmatmul.mubr.bf16.gmra.mrb[0].mxu0 %v135
    %v522 = vpop.f32.mrb[0].mxu0
    %v523 = vadd.f32 0.0, %v522
    %v524 = vpop.f32.mrb[0].mxu0
    %v525 = vadd.f32 0.0, %v524
    %v526 = vpop.f32.mrb[0].mxu0
    %v527 = vadd.f32 0.0, %v526
    %v528 = vpop.f32.mrb[0].mxu0
    %v529 = vadd.f32 0.0, %v528
    %530 = vmatprep.mubr.bf16.mxu0 0
    %531 = vmatmul.mubr.bf16.gmra.mrb[0].mxu0 %v138
    %v532 = vpop.f32.mrb[0].mxu0
    %v533 = vadd.f32 0.0, %v532
    %v534 = vpop.f32.mrb[0].mxu0
    %v535 = vadd.f32 0.0, %v534
    %v536 = vpop.f32.mrb[0].mxu0
    %v537 = vadd.f32 0.0, %v536
    %v538 = vpop.f32.mrb[0].mxu0
    %v539 = vadd.f32 0.0, %v538
    %540 = vmatprep.mubr.bf16.mxu0 0
    %541 = vmatmul.mubr.bf16.gmra.mrb[0].mxu0 %v141
    %v542 = vpop.f32.mrb[0].mxu0
    %v543 = vadd.f32 0.0, %v542
    %v544 = vpop.f32.mrb[0].mxu0
    %v545 = vadd.f32 0.0, %v544
    %v546 = vpop.f32.mrb[0].mxu0
    %v547 = vadd.f32 0.0, %v546
    %v548 = vpop.f32.mrb[0].mxu0
    %v549 = vadd.f32 0.0, %v548
    %550 = vdwg.mxu0
    %551 = vmatprep.subr.bf16.mxu0 %v178
    %552 = vmatpush1.bf16.msra.mxu0 %v175
    %553 = vmatprep.subr.bf16.mxu0 0
    %554 = vmatpush1.bf16.msra.mxu0 0
    %555 = vmatprep.subr.bf16.mxu0 0
    %556 = vmatpush1.bf16.msra.mxu0 0
    %557 = vmatprep.subr.bf16.mxu0 0
    %558 = vmatpush1.bf16.msra.mxu0 0
    %559 = vmatprep.subr.bf16.mxu0 0
    %560 = vmatpush1.bf16.msra.mxu0 0
    %561 = vmatprep.subr.bf16.mxu0 0
    %562 = vmatpush1.bf16.msra.mxu0 0
    %563 = vmatprep.subr.bf16.mxu0 0
    %564 = vmatpush1.bf16.msra.mxu0 0
    %565 = vmatprep.subr.bf16.mxu0 0
    %566 = vmatpush1.bf16.msra.mxu0 0
    %567 = vmatprep.subr.bf16.mxu0 0
    %568 = vmatpush1.bf16.msra.mxu0 0
    %569 = vmatprep.subr.bf16.mxu0 0
    %570 = vmatpush1.bf16.msra.mxu0 0
    %571 = vmatprep.subr.bf16.mxu0 0
    %572 = vmatpush1.bf16.msra.mxu0 0
    %573 = vmatprep.subr.bf16.mxu0 0
    %574 = vmatpush1.bf16.msra.mxu0 0
    %575 = vmatprep.subr.bf16.mxu0 0
    %576 = vmatpush1.bf16.msra.mxu0 0
    %577 = vmatprep.subr.bf16.mxu0 0
    %578 = vmatpush1.bf16.msra.mxu0 0
    %579 = vmatprep.subr.bf16.mxu0 0
    %580 = vmatpush1.bf16.msra.mxu0 0
    %581 = vmatprep.subr.bf16.mxu0 0
    %582 = vmatpush1.bf16.msra.mxu0 0
    %583 = vmatprep.mubr.bf16.mxu0 0
    %584 = vmatmul.mubr.bf16.gmra.mrb[0].mxu0 %v132
    %v585 = vpop.f32.mrb[0].mxu0
    %v586 = vadd.f32 0.0, %v585
    %v587 = vpop.f32.mrb[0].mxu0
    %v588 = vadd.f32 0.0, %v587
    %v589 = vpop.f32.mrb[0].mxu0
    %v590 = vadd.f32 0.0, %v589
    %v591 = vpop.f32.mrb[0].mxu0
    %v592 = vadd.f32 0.0, %v591
    %593 = vmatprep.mubr.bf16.mxu0 0
    %594 = vmatmul.mubr.bf16.gmra.mrb[0].mxu0 %v135
    %v595 = vpop.f32.mrb[0].mxu0
    %v596 = vadd.f32 0.0, %v595
    %v597 = vpop.f32.mrb[0].mxu0
    %v598 = vadd.f32 0.0, %v597
    %v599 = vpop.f32.mrb[0].mxu0
    %v600 = vadd.f32 0.0, %v599
    %v601 = vpop.f32.mrb[0].mxu0
    %v602 = vadd.f32 0.0, %v601
    %603 = vmatprep.mubr.bf16.mxu0 0
    %604 = vmatmul.mubr.bf16.gmra.mrb[0].mxu0 %v138
    %v605 = vpop.f32.mrb[0].mxu0
    %v606 = vadd.f32 0.0, %v605
    %v607 = vpop.f32.mrb[0].mxu0
    %v608 = vadd.f32 0.0, %v607
    %v609 = vpop.f32.mrb[0].mxu0
    %v610 = vadd.f32 0.0, %v609
    %v611 = vpop.f32.mrb[0].mxu0
    %v612 = vadd.f32 0.0, %v611
    %613 = vmatprep.mubr.bf16.mxu0 0
    %614 = vmatmul.mubr.bf16.gmra.mrb[0].mxu0 %v141
    %v615 = vpop.f32.mrb[0].mxu0
    %v616 = vadd.f32 0.0, %v615
    %v617 = vpop.f32.mrb[0].mxu0
    %v618 = vadd.f32 0.0, %v617
    %v619 = vpop.f32.mrb[0].mxu0
    %v620 = vadd.f32 0.0, %v619
    %v621 = vpop.f32.mrb[0].mxu0
    %v622 = vadd.f32 0.0, %v621
    %623 = vdwg.mxu0
    %624 = vmatprep.subr.bf16.mxu0 %v184
    %625 = vmatpush1.bf16.msra.mxu0 %v181
    %626 = vmatprep.subr.bf16.mxu0 0
    %627 = vmatpush1.bf16.msra.mxu0 0
    %628 = vmatprep.subr.bf16.mxu0 0
    %629 = vmatpush1.bf16.msra.mxu0 0
    %630 = vmatprep.subr.bf16.mxu0 0
    %631 = vmatpush1.bf16.msra.mxu0 0
    %632 = vmatprep.subr.bf16.mxu0 0
    %633 = vmatpush1.bf16.msra.mxu0 0
    %634 = vmatprep.subr.bf16.mxu0 0
    %635 = vmatpush1.bf16.msra.mxu0 0
    %636 = vmatprep.subr.bf16.mxu0 0
    %637 = vmatpush1.bf16.msra.mxu0 0
    %638 = vmatprep.subr.bf16.mxu0 0
    %639 = vmatpush1.bf16.msra.mxu0 0
    %640 = vmatprep.subr.bf16.mxu0 0
    %641 = vmatpush1.bf16.msra.mxu0 0
    %642 = vmatprep.subr.bf16.mxu0 0
    %643 = vmatpush1.bf16.msra.mxu0 0
    %644 = vmatprep.subr.bf16.mxu0 0
    %645 = vmatpush1.bf16.msra.mxu0 0
    %646 = vmatprep.subr.bf16.mxu0 0
    %647 = vmatpush1.bf16.msra.mxu0 0
    %648 = vmatprep.subr.bf16.mxu0 0
    %649 = vmatpush1.bf16.msra.mxu0 0
    %650 = vmatprep.subr.bf16.mxu0 0
    %651 = vmatpush1.bf16.msra.mxu0 0
    %652 = vmatprep.subr.bf16.mxu0 0
    %653 = vmatpush1.bf16.msra.mxu0 0
    %654 = vmatprep.subr.bf16.mxu0 0
    %655 = vmatpush1.bf16.msra.mxu0 0
    %656 = vmatprep.mubr.bf16.mxu0 0
    %657 = vmatmul.mubr.bf16.gmra.mrb[0].mxu0 %v132
    %v658 = vpop.f32.mrb[0].mxu0
    %v659 = vadd.f32 0.0, %v658
    %v660 = vpop.f32.mrb[0].mxu0
    %v661 = vadd.f32 0.0, %v660
    %v662 = vpop.f32.mrb[0].mxu0
    %v663 = vadd.f32 0.0, %v662
    %v664 = vpop.f32.mrb[0].mxu0
    %v665 = vadd.f32 0.0, %v664
    %666 = vmatprep.mubr.bf16.mxu0 0
    %667 = vmatmul.mubr.bf16.gmra.mrb[0].mxu0 %v135
    %v668 = vpop.f32.mrb[0].mxu0
    %v669 = vadd.f32 0.0, %v668
    %v670 = vpop.f32.mrb[0].mxu0
    %v671 = vadd.f32 0.0, %v670
    %v672 = vpop.f32.mrb[0].mxu0
    %v673 = vadd.f32 0.0, %v672
    %v674 = vpop.f32.mrb[0].mxu0
    %v675 = vadd.f32 0.0, %v674
    %676 = vmatprep.mubr.bf16.mxu0 0
    %677 = vmatmul.mubr.bf16.gmra.mrb[0].mxu0 %v138
    %v678 = vpop.f32.mrb[0].mxu0
    %v679 = vadd.f32 0.0, %v678
    %v680 = vpop.f32.mrb[0].mxu0
    %v681 = vadd.f32 0.0, %v680
    %v682 = vpop.f32.mrb[0].mxu0
    %v683 = vadd.f32 0.0, %v682
    %v684 = vpop.f32.mrb[0].mxu0
    %v685 = vadd.f32 0.0, %v684
    %686 = vmatprep.mubr.bf16.mxu0 0
    %687 = vmatmul.mubr.bf16.gmra.mrb[0].mxu0 %v141
    %v688 = vpop.f32.mrb[0].mxu0
    %v689 = vadd.f32 0.0, %v688
    %v690 = vpop.f32.mrb[0].mxu0
    %v691 = vadd.f32 0.0, %v690
    %v692 = vpop.f32.mrb[0].mxu0
    %v693 = vadd.f32 0.0, %v692
    %v694 = vpop.f32.mrb[0].mxu0
    %v695 = vadd.f32 0.0, %v694
    %696 = vdwg.mxu0
    %v705 = vunpack.c.l.b16 %v22
    %v706 = vunpack.c.l.b16 %v23
    %v707 = vunpack.c.l.b16 %v24
    %v708 = vunpack.c.l.b16 %v25
    %v709 = vunpack.c.l.b16 %v26
    %v710 = vunpack.c.l.b16 %v27
    %v711 = vunpack.c.l.b16 %v28
    %v712 = vunpack.c.l.b16 %v29
    %v713 = vpack.c.b16 %v706, %v705
    %v714 = vpack.c.b16 %v708, %v707
    %v715 = vpack.c.b16 %v710, %v709
    %v716 = vpack.c.b16 %v712, %v711
    %v721 = vcombine.high %v30, %v30
    %v723 = vunpack.c.l.s4 1983009808
    %v724 = vunpack.c.0.s8 %v723
    %v725 = vlaneseq
    %v726 = vshrl.u32 %v725, 7
    %v727 = vsub.s32 %v724, %v726
    %v728 = vrot.slane %v30, %v727
    %v730 = vunpack.c.l.s4 1983009808
    %v731 = vunpack.c.0.s8 %v730
    %v732 = vlaneseq
    %v733 = vshrl.u32 %v732, 7
    %v734 = vsub.s32 %v731, %v733
    %v735 = vrot.slane %v721, %v734
    %v736 = vcombine.high %v728, %v728
    %v737 = vcombine.high %v735, %v735
    %v738 = vcombine.high %v31, %v31
    %v740 = vunpack.c.l.s4 1983009808
    %v741 = vunpack.c.0.s8 %v740
    %v742 = vlaneseq
    %v743 = vshrl.u32 %v742, 7
    %v744 = vsub.s32 %v741, %v743
    %v745 = vrot.slane %v31, %v744
    %v747 = vunpack.c.l.s4 1983009808
    %v748 = vunpack.c.0.s8 %v747
    %v749 = vlaneseq
    %v750 = vshrl.u32 %v749, 7
    %v751 = vsub.s32 %v748, %v750
    %v752 = vrot.slane %v738, %v751
    %v753 = vcombine.high %v745, %v745
    %v754 = vcombine.high %v752, %v752
    %v755 = vcombine.high %v32, %v32
    %v757 = vunpack.c.l.s4 1983009808
    %v758 = vunpack.c.0.s8 %v757
    %v759 = vlaneseq
    %v760 = vshrl.u32 %v759, 7
    %v761 = vsub.s32 %v758, %v760
    %v762 = vrot.slane %v32, %v761
    %v764 = vunpack.c.l.s4 1983009808
    %v765 = vunpack.c.0.s8 %v764
    %v766 = vlaneseq
    %v767 = vshrl.u32 %v766, 7
    %v768 = vsub.s32 %v765, %v767
    %v769 = vrot.slane %v755, %v768
    %v770 = vcombine.high %v762, %v762
    %v771 = vcombine.high %v769, %v769
    %v773 = vunpack.c.l.s4 1983009808
    %v774 = vunpack.c.0.s8 %v773
    %v775 = vlaneseq
    %v776 = vshrl.u32 %v775, 7
    %v777 = vsub.s32 %v774, %v776
    %v778 = vrot.slane %v33, %v777
    %v779 = vcombine.high %v778, %v778
    %v781 = vsel %vm130, %v713, 0
    %v784 = vsel %vm130, %v714, 0
    %v787 = vsel %vm130, %v715, 0
    %v790 = vsel %vm130, %v716, 0
    %v793 = vsel %vm143, %v728, 0
    %v796 = vsel %vm143, %v736, 0
    %v799 = vsel %vm143, %v735, 0
    %v802 = vsel %vm143, %v737, 0
    %v805 = vsel %vm143, %v745, 0
    %v808 = vsel %vm143, %v753, 0
    %v811 = vsel %vm143, %v752, 0
    %v814 = vsel %vm143, %v754, 0
    %v817 = vsel %vm143, %v762, 0
    %v820 = vsel %vm143, %v770, 0
    %v823 = vsel %vm143, %v769, 0
    %v826 = vsel %vm143, %v771, 0
    %v829 = vsel %vm143, %v778, 0
    %v832 = vsel %vm143, %v779, 0
    %834 = vmatprep.subr.bf16.mxu0 %v796
    %835 = vmatpush1.bf16.msra.mxu0 %v793
    %836 = vmatprep.subr.bf16.mxu0 0
    %837 = vmatpush1.bf16.msra.mxu0 0
    %838 = vmatprep.subr.bf16.mxu0 0
    %839 = vmatpush1.bf16.msra.mxu0 0
    %840 = vmatprep.subr.bf16.mxu0 0
    %841 = vmatpush1.bf16.msra.mxu0 0
    %842 = vmatprep.subr.bf16.mxu0 0
    %843 = vmatpush1.bf16.msra.mxu0 0
    %844 = vmatprep.subr.bf16.mxu0 0
    %845 = vmatpush1.bf16.msra.mxu0 0
    %846 = vmatprep.subr.bf16.mxu0 0
    %847 = vmatpush1.bf16.msra.mxu0 0
    %848 = vmatprep.subr.bf16.mxu0 0
    %849 = vmatpush1.bf16.msra.mxu0 0
    %850 = vmatprep.subr.bf16.mxu0 0
    %851 = vmatpush1.bf16.msra.mxu0 0
    %852 = vmatprep.subr.bf16.mxu0 0
    %853 = vmatpush1.bf16.msra.mxu0 0
    %854 = vmatprep.subr.bf16.mxu0 0
    %855 = vmatpush1.bf16.msra.mxu0 0
    %856 = vmatprep.subr.bf16.mxu0 0
    %857 = vmatpush1.bf16.msra.mxu0 0
    %858 = vmatprep.subr.bf16.mxu0 0
    %859 = vmatpush1.bf16.msra.mxu0 0
    %860 = vmatprep.subr.bf16.mxu0 0
    %861 = vmatpush1.bf16.msra.mxu0 0
    %862 = vmatprep.subr.bf16.mxu0 0
    %863 = vmatpush1.bf16.msra.mxu0 0
    %864 = vmatprep.subr.bf16.mxu0 0
    %865 = vmatpush1.bf16.msra.mxu0 0
    %866 = vmatprep.mubr.bf16.mxu0 0
    %867 = vmatmul.mubr.bf16.gmra.mrb[0].mxu0 %v781
    %v868 = vpop.f32.mrb[0].mxu0
    %v869 = vadd.f32 %v221, %v868
    %v870 = vpop.f32.mrb[0].mxu0
    %v871 = vadd.f32 %v223, %v870
    %v872 = vpop.f32.mrb[0].mxu0
    %v873 = vadd.f32 %v225, %v872
    %v874 = vpop.f32.mrb[0].mxu0
    %v875 = vadd.f32 %v227, %v874
    %876 = vmatprep.mubr.bf16.mxu0 0
    %877 = vmatmul.mubr.bf16.gmra.mrb[0].mxu0 %v784
    %v878 = vpop.f32.mrb[0].mxu0
    %v879 = vadd.f32 %v231, %v878
    %v880 = vpop.f32.mrb[0].mxu0
    %v881 = vadd.f32 %v233, %v880
    %v882 = vpop.f32.mrb[0].mxu0
    %v883 = vadd.f32 %v235, %v882
    %v884 = vpop.f32.mrb[0].mxu0
    %v885 = vadd.f32 %v237, %v884
    %886 = vmatprep.mubr.bf16.mxu0 0
    %887 = vmatmul.mubr.bf16.gmra.mrb[0].mxu0 %v787
    %v888 = vpop.f32.mrb[0].mxu0
    %v889 = vadd.f32 %v241, %v888
    %v890 = vpop.f32.mrb[0].mxu0
    %v891 = vadd.f32 %v243, %v890
    %v892 = vpop.f32.mrb[0].mxu0
    %v893 = vadd.f32 %v245, %v892
    %v894 = vpop.f32.mrb[0].mxu0
    %v895 = vadd.f32 %v247, %v894
    %896 = vmatprep.mubr.bf16.mxu0 0
    %897 = vmatmul.mubr.bf16.gmra.mrb[0].mxu0 %v790
    %v898 = vpop.f32.mrb[0].mxu0
    %v899 = vadd.f32 %v251, %v898
    %v900 = vpop.f32.mrb[0].mxu0
    %v901 = vadd.f32 %v253, %v900
    %v902 = vpop.f32.mrb[0].mxu0
    %v903 = vadd.f32 %v255, %v902
    %v904 = vpop.f32.mrb[0].mxu0
    %v905 = vadd.f32 %v257, %v904
    %906 = vdwg.mxu0
    %907 = vmatprep.subr.bf16.mxu0 %v802
    %908 = vmatpush1.bf16.msra.mxu0 %v799
    %909 = vmatprep.subr.bf16.mxu0 0
    %910 = vmatpush1.bf16.msra.mxu0 0
    %911 = vmatprep.subr.bf16.mxu0 0
    %912 = vmatpush1.bf16.msra.mxu0 0
    %913 = vmatprep.subr.bf16.mxu0 0
    %914 = vmatpush1.bf16.msra.mxu0 0
    %915 = vmatprep.subr.bf16.mxu0 0
    %916 = vmatpush1.bf16.msra.mxu0 0
    %917 = vmatprep.subr.bf16.mxu0 0
    %918 = vmatpush1.bf16.msra.mxu0 0
    %919 = vmatprep.subr.bf16.mxu0 0
    %920 = vmatpush1.bf16.msra.mxu0 0
    %921 = vmatprep.subr.bf16.mxu0 0
    %922 = vmatpush1.bf16.msra.mxu0 0
    %923 = vmatprep.subr.bf16.mxu0 0
    %924 = vmatpush1.bf16.msra.mxu0 0
    %925 = vmatprep.subr.bf16.mxu0 0
    %926 = vmatpush1.bf16.msra.mxu0 0
    %927 = vmatprep.subr.bf16.mxu0 0
    %928 = vmatpush1.bf16.msra.mxu0 0
    %929 = vmatprep.subr.bf16.mxu0 0
    %930 = vmatpush1.bf16.msra.mxu0 0
    %931 = vmatprep.subr.bf16.mxu0 0
    %932 = vmatpush1.bf16.msra.mxu0 0
    %933 = vmatprep.subr.bf16.mxu0 0
    %934 = vmatpush1.bf16.msra.mxu0 0
    %935 = vmatprep.subr.bf16.mxu0 0
    %936 = vmatpush1.bf16.msra.mxu0 0
    %937 = vmatprep.subr.bf16.mxu0 0
    %938 = vmatpush1.bf16.msra.mxu0 0
    %939 = vmatprep.mubr.bf16.mxu0 0
    %940 = vmatmul.mubr.bf16.gmra.mrb[0].mxu0 %v781
    %v941 = vpop.f32.mrb[0].mxu0
    %v942 = vadd.f32 %v294, %v941
    %v943 = vpop.f32.mrb[0].mxu0
    %v944 = vadd.f32 %v296, %v943
    %v945 = vpop.f32.mrb[0].mxu0
    %v946 = vadd.f32 %v298, %v945
    %v947 = vpop.f32.mrb[0].mxu0
    %v948 = vadd.f32 %v300, %v947
    %949 = vmatprep.mubr.bf16.mxu0 0
    %950 = vmatmul.mubr.bf16.gmra.mrb[0].mxu0 %v784
    %v951 = vpop.f32.mrb[0].mxu0
    %v952 = vadd.f32 %v304, %v951
    %v953 = vpop.f32.mrb[0].mxu0
    %v954 = vadd.f32 %v306, %v953
    %v955 = vpop.f32.mrb[0].mxu0
    %v956 = vadd.f32 %v308, %v955
    %v957 = vpop.f32.mrb[0].mxu0
    %v958 = vadd.f32 %v310, %v957
    %959 = vmatprep.mubr.bf16.mxu0 0
    %960 = vmatmul.mubr.bf16.gmra.mrb[0].mxu0 %v787
    %v961 = vpop.f32.mrb[0].mxu0
    %v962 = vadd.f32 %v314, %v961
    %v963 = vpop.f32.mrb[0].mxu0
    %v964 = vadd.f32 %v316, %v963
    %v965 = vpop.f32.mrb[0].mxu0
    %v966 = vadd.f32 %v318, %v965
    %v967 = vpop.f32.mrb[0].mxu0
    %v968 = vadd.f32 %v320, %v967
    %969 = vmatprep.mubr.bf16.mxu0 0
    %970 = vmatmul.mubr.bf16.gmra.mrb[0].mxu0 %v790
    %v971 = vpop.f32.mrb[0].mxu0
    %v972 = vadd.f32 %v324, %v971
    %v973 = vpop.f32.mrb[0].mxu0
    %v974 = vadd.f32 %v326, %v973
    %v975 = vpop.f32.mrb[0].mxu0
    %v976 = vadd.f32 %v328, %v975
    %v977 = vpop.f32.mrb[0].mxu0
    %v978 = vadd.f32 %v330, %v977
    %979 = vdwg.mxu0
    %980 = vmatprep.subr.bf16.mxu0 %v808
    %981 = vmatpush1.bf16.msra.mxu0 %v805
    %982 = vmatprep.subr.bf16.mxu0 0
    %983 = vmatpush1.bf16.msra.mxu0 0
    %984 = vmatprep.subr.bf16.mxu0 0
    %985 = vmatpush1.bf16.msra.mxu0 0
    %986 = vmatprep.subr.bf16.mxu0 0
    %987 = vmatpush1.bf16.msra.mxu0 0
    %988 = vmatprep.subr.bf16.mxu0 0
    %989 = vmatpush1.bf16.msra.mxu0 0
    %990 = vmatprep.subr.bf16.mxu0 0
    %991 = vmatpush1.bf16.msra.mxu0 0
    %992 = vmatprep.subr.bf16.mxu0 0
    %993 = vmatpush1.bf16.msra.mxu0 0
    %994 = vmatprep.subr.bf16.mxu0 0
    %995 = vmatpush1.bf16.msra.mxu0 0
    %996 = vmatprep.subr.bf16.mxu0 0
    %997 = vmatpush1.bf16.msra.mxu0 0
    %998 = vmatprep.subr.bf16.mxu0 0
    %999 = vmatpush1.bf16.msra.mxu0 0
    %1000 = vmatprep.subr.bf16.mxu0 0
    %1001 = vmatpush1.bf16.msra.mxu0 0
    %1002 = vmatprep.subr.bf16.mxu0 0
    %1003 = vmatpush1.bf16.msra.mxu0 0
    %1004 = vmatprep.subr.bf16.mxu0 0
    %1005 = vmatpush1.bf16.msra.mxu0 0
    %1006 = vmatprep.subr.bf16.mxu0 0
    %1007 = vmatpush1.bf16.msra.mxu0 0
    %1008 = vmatprep.subr.bf16.mxu0 0
    %1009 = vmatpush1.bf16.msra.mxu0 0
    %1010 = vmatprep.subr.bf16.mxu0 0
    %1011 = vmatpush1.bf16.msra.mxu0 0
    %1012 = vmatprep.mubr.bf16.mxu0 0
    %1013 = vmatmul.mubr.bf16.gmra.mrb[0].mxu0 %v781
    %v1014 = vpop.f32.mrb[0].mxu0
    %v1015 = vadd.f32 %v367, %v1014
    %v1016 = vpop.f32.mrb[0].mxu0
    %v1017 = vadd.f32 %v369, %v1016
    %v1018 = vpop.f32.mrb[0].mxu0
    %v1019 = vadd.f32 %v371, %v1018
    %v1020 = vpop.f32.mrb[0].mxu0
    %v1021 = vadd.f32 %v373, %v1020
    %1022 = vmatprep.mubr.bf16.mxu0 0
    %1023 = vmatmul.mubr.bf16.gmra.mrb[0].mxu0 %v784
    %v1024 = vpop.f32.mrb[0].mxu0
    %v1025 = vadd.f32 %v377, %v1024
    %v1026 = vpop.f32.mrb[0].mxu0
    %v1027 = vadd.f32 %v379, %v1026
    %v1028 = vpop.f32.mrb[0].mxu0
    %v1029 = vadd.f32 %v381, %v1028
    %v1030 = vpop.f32.mrb[0].mxu0
    %v1031 = vadd.f32 %v383, %v1030
    %1032 = vmatprep.mubr.bf16.mxu0 0
    %1033 = vmatmul.mubr.bf16.gmra.mrb[0].mxu0 %v787
    %v1034 = vpop.f32.mrb[0].mxu0
    %v1035 = vadd.f32 %v387, %v1034
    %v1036 = vpop.f32.mrb[0].mxu0
    %v1037 = vadd.f32 %v389, %v1036
    %v1038 = vpop.f32.mrb[0].mxu0
    %v1039 = vadd.f32 %v391, %v1038
    %v1040 = vpop.f32.mrb[0].mxu0
    %v1041 = vadd.f32 %v393, %v1040
    %1042 = vmatprep.mubr.bf16.mxu0 0
    %1043 = vmatmul.mubr.bf16.gmra.mrb[0].mxu0 %v790
    %v1044 = vpop.f32.mrb[0].mxu0
    %v1045 = vadd.f32 %v397, %v1044
    %v1046 = vpop.f32.mrb[0].mxu0
    %v1047 = vadd.f32 %v399, %v1046
    %v1048 = vpop.f32.mrb[0].mxu0
    %v1049 = vadd.f32 %v401, %v1048
    %v1050 = vpop.f32.mrb[0].mxu0
    %v1051 = vadd.f32 %v403, %v1050
    %1052 = vdwg.mxu0
    %1053 = vmatprep.subr.bf16.mxu0 %v814
    %1054 = vmatpush1.bf16.msra.mxu0 %v811
    %1055 = vmatprep.subr.bf16.mxu0 0
    %1056 = vmatpush1.bf16.msra.mxu0 0
    %1057 = vmatprep.subr.bf16.mxu0 0
    %1058 = vmatpush1.bf16.msra.mxu0 0
    %1059 = vmatprep.subr.bf16.mxu0 0
    %1060 = vmatpush1.bf16.msra.mxu0 0
    %1061 = vmatprep.subr.bf16.mxu0 0
    %1062 = vmatpush1.bf16.msra.mxu0 0
    %1063 = vmatprep.subr.bf16.mxu0 0
    %1064 = vmatpush1.bf16.msra.mxu0 0
    %1065 = vmatprep.subr.bf16.mxu0 0
    %1066 = vmatpush1.bf16.msra.mxu0 0
    %1067 = vmatprep.subr.bf16.mxu0 0
    %1068 = vmatpush1.bf16.msra.mxu0 0
    %1069 = vmatprep.subr.bf16.mxu0 0
    %1070 = vmatpush1.bf16.msra.mxu0 0
    %1071 = vmatprep.subr.bf16.mxu0 0
    %1072 = vmatpush1.bf16.msra.mxu0 0
    %1073 = vmatprep.subr.bf16.mxu0 0
    %1074 = vmatpush1.bf16.msra.mxu0 0
    %1075 = vmatprep.subr.bf16.mxu0 0
    %1076 = vmatpush1.bf16.msra.mxu0 0
    %1077 = vmatprep.subr.bf16.mxu0 0
    %1078 = vmatpush1.bf16.msra.mxu0 0
    %1079 = vmatprep.subr.bf16.mxu0 0
    %1080 = vmatpush1.bf16.msra.mxu0 0
    %1081 = vmatprep.subr.bf16.mxu0 0
    %1082 = vmatpush1.bf16.msra.mxu0 0
    %1083 = vmatprep.subr.bf16.mxu0 0
    %1084 = vmatpush1.bf16.msra.mxu0 0
    %1085 = vmatprep.mubr.bf16.mxu0 0
    %1086 = vmatmul.mubr.bf16.gmra.mrb[0].mxu0 %v781
    %v1087 = vpop.f32.mrb[0].mxu0
    %v1088 = vadd.f32 %v440, %v1087
    %v1089 = vpop.f32.mrb[0].mxu0
    %v1090 = vadd.f32 %v442, %v1089
    %v1091 = vpop.f32.mrb[0].mxu0
    %v1092 = vadd.f32 %v444, %v1091
    %v1093 = vpop.f32.mrb[0].mxu0
    %v1094 = vadd.f32 %v446, %v1093
    %1095 = vmatprep.mubr.bf16.mxu0 0
    %1096 = vmatmul.mubr.bf16.gmra.mrb[0].mxu0 %v784
    %v1097 = vpop.f32.mrb[0].mxu0
    %v1098 = vadd.f32 %v450, %v1097
    %v1099 = vpop.f32.mrb[0].mxu0
    %v1100 = vadd.f32 %v452, %v1099
    %v1101 = vpop.f32.mrb[0].mxu0
    %v1102 = vadd.f32 %v454, %v1101
    %v1103 = vpop.f32.mrb[0].mxu0
    %v1104 = vadd.f32 %v456, %v1103
    %1105 = vmatprep.mubr.bf16.mxu0 0
    %1106 = vmatmul.mubr.bf16.gmra.mrb[0].mxu0 %v787
    %v1107 = vpop.f32.mrb[0].mxu0
    %v1108 = vadd.f32 %v460, %v1107
    %v1109 = vpop.f32.mrb[0].mxu0
    %v1110 = vadd.f32 %v462, %v1109
    %v1111 = vpop.f32.mrb[0].mxu0
    %v1112 = vadd.f32 %v464, %v1111
    %v1113 = vpop.f32.mrb[0].mxu0
    %v1114 = vadd.f32 %v466, %v1113
    %1115 = vmatprep.mubr.bf16.mxu0 0
    %1116 = vmatmul.mubr.bf16.gmra.mrb[0].mxu0 %v790
    %v1117 = vpop.f32.mrb[0].mxu0
    %v1118 = vadd.f32 %v470, %v1117
    %v1119 = vpop.f32.mrb[0].mxu0
    %v1120 = vadd.f32 %v472, %v1119
    %v1121 = vpop.f32.mrb[0].mxu0
    %v1122 = vadd.f32 %v474, %v1121
    %v1123 = vpop.f32.mrb[0].mxu0
    %v1124 = vadd.f32 %v476, %v1123
    %1125 = vdwg.mxu0
    %1126 = vmatprep.subr.bf16.mxu0 %v820
    %1127 = vmatpush1.bf16.msra.mxu0 %v817
    %1128 = vmatprep.subr.bf16.mxu0 0
    %1129 = vmatpush1.bf16.msra.mxu0 0
    %1130 = vmatprep.subr.bf16.mxu0 0
    %1131 = vmatpush1.bf16.msra.mxu0 0
    %1132 = vmatprep.subr.bf16.mxu0 0
    %1133 = vmatpush1.bf16.msra.mxu0 0
    %1134 = vmatprep.subr.bf16.mxu0 0
    %1135 = vmatpush1.bf16.msra.mxu0 0
    %1136 = vmatprep.subr.bf16.mxu0 0
    %1137 = vmatpush1.bf16.msra.mxu0 0
    %1138 = vmatprep.subr.bf16.mxu0 0
    %1139 = vmatpush1.bf16.msra.mxu0 0
    %1140 = vmatprep.subr.bf16.mxu0 0
    %1141 = vmatpush1.bf16.msra.mxu0 0
    %1142 = vmatprep.subr.bf16.mxu0 0
    %1143 = vmatpush1.bf16.msra.mxu0 0
    %1144 = vmatprep.subr.bf16.mxu0 0
    %1145 = vmatpush1.bf16.msra.mxu0 0
    %1146 = vmatprep.subr.bf16.mxu0 0
    %1147 = vmatpush1.bf16.msra.mxu0 0
    %1148 = vmatprep.subr.bf16.mxu0 0
    %1149 = vmatpush1.bf16.msra.mxu0 0
    %1150 = vmatprep.subr.bf16.mxu0 0
    %1151 = vmatpush1.bf16.msra.mxu0 0
    %1152 = vmatprep.subr.bf16.mxu0 0
    %1153 = vmatpush1.bf16.msra.mxu0 0
    %1154 = vmatprep.subr.bf16.mxu0 0
    %1155 = vmatpush1.bf16.msra.mxu0 0
    %1156 = vmatprep.subr.bf16.mxu0 0
    %1157 = vmatpush1.bf16.msra.mxu0 0
    %1158 = vmatprep.mubr.bf16.mxu0 0
    %1159 = vmatmul.mubr.bf16.gmra.mrb[0].mxu0 %v781
    %v1160 = vpop.f32.mrb[0].mxu0
    %v1161 = vadd.f32 %v513, %v1160
    %v1162 = vpop.f32.mrb[0].mxu0
    %v1163 = vadd.f32 %v515, %v1162
    %v1164 = vpop.f32.mrb[0].mxu0
    %v1165 = vadd.f32 %v517, %v1164
    %v1166 = vpop.f32.mrb[0].mxu0
    %v1167 = vadd.f32 %v519, %v1166
    %1168 = vmatprep.mubr.bf16.mxu0 0
    %1169 = vmatmul.mubr.bf16.gmra.mrb[0].mxu0 %v784
    %v1170 = vpop.f32.mrb[0].mxu0
    %v1171 = vadd.f32 %v523, %v1170
    %v1172 = vpop.f32.mrb[0].mxu0
    %v1173 = vadd.f32 %v525, %v1172
    %v1174 = vpop.f32.mrb[0].mxu0
    %v1175 = vadd.f32 %v527, %v1174
    %v1176 = vpop.f32.mrb[0].mxu0
    %v1177 = vadd.f32 %v529, %v1176
    %1178 = vmatprep.mubr.bf16.mxu0 0
    %1179 = vmatmul.mubr.bf16.gmra.mrb[0].mxu0 %v787
    %v1180 = vpop.f32.mrb[0].mxu0
    %v1181 = vadd.f32 %v533, %v1180
    %v1182 = vpop.f32.mrb[0].mxu0
    %v1183 = vadd.f32 %v535, %v1182
    %v1184 = vpop.f32.mrb[0].mxu0
    %v1185 = vadd.f32 %v537, %v1184
    %v1186 = vpop.f32.mrb[0].mxu0
    %v1187 = vadd.f32 %v539, %v1186
    %1188 = vmatprep.mubr.bf16.mxu0 0
    %1189 = vmatmul.mubr.bf16.gmra.mrb[0].mxu0 %v790
    %v1190 = vpop.f32.mrb[0].mxu0
    %v1191 = vadd.f32 %v543, %v1190
    %v1192 = vpop.f32.mrb[0].mxu0
    %v1193 = vadd.f32 %v545, %v1192
    %v1194 = vpop.f32.mrb[0].mxu0
    %v1195 = vadd.f32 %v547, %v1194
    %v1196 = vpop.f32.mrb[0].mxu0
    %v1197 = vadd.f32 %v549, %v1196
    %1198 = vdwg.mxu0
    %1199 = vmatprep.subr.bf16.mxu0 %v826
    %1200 = vmatpush1.bf16.msra.mxu0 %v823
    %1201 = vmatprep.subr.bf16.mxu0 0
    %1202 = vmatpush1.bf16.msra.mxu0 0
    %1203 = vmatprep.subr.bf16.mxu0 0
    %1204 = vmatpush1.bf16.msra.mxu0 0
    %1205 = vmatprep.subr.bf16.mxu0 0
    %1206 = vmatpush1.bf16.msra.mxu0 0
    %1207 = vmatprep.subr.bf16.mxu0 0
    %1208 = vmatpush1.bf16.msra.mxu0 0
    %1209 = vmatprep.subr.bf16.mxu0 0
    %1210 = vmatpush1.bf16.msra.mxu0 0
    %1211 = vmatprep.subr.bf16.mxu0 0
    %1212 = vmatpush1.bf16.msra.mxu0 0
    %1213 = vmatprep.subr.bf16.mxu0 0
    %1214 = vmatpush1.bf16.msra.mxu0 0
    %1215 = vmatprep.subr.bf16.mxu0 0
    %1216 = vmatpush1.bf16.msra.mxu0 0
    %1217 = vmatprep.subr.bf16.mxu0 0
    %1218 = vmatpush1.bf16.msra.mxu0 0
    %1219 = vmatprep.subr.bf16.mxu0 0
    %1220 = vmatpush1.bf16.msra.mxu0 0
    %1221 = vmatprep.subr.bf16.mxu0 0
    %1222 = vmatpush1.bf16.msra.mxu0 0
    %1223 = vmatprep.subr.bf16.mxu0 0
    %1224 = vmatpush1.bf16.msra.mxu0 0
    %1225 = vmatprep.subr.bf16.mxu0 0
    %1226 = vmatpush1.bf16.msra.mxu0 0
    %1227 = vmatprep.subr.bf16.mxu0 0
    %1228 = vmatpush1.bf16.msra.mxu0 0
    %1229 = vmatprep.subr.bf16.mxu0 0
    %1230 = vmatpush1.bf16.msra.mxu0 0
    %1231 = vmatprep.mubr.bf16.mxu0 0
    %1232 = vmatmul.mubr.bf16.gmra.mrb[0].mxu0 %v781
    %v1233 = vpop.f32.mrb[0].mxu0
    %v1234 = vadd.f32 %v586, %v1233
    %v1235 = vpop.f32.mrb[0].mxu0
    %v1236 = vadd.f32 %v588, %v1235
    %v1237 = vpop.f32.mrb[0].mxu0
    %v1238 = vadd.f32 %v590, %v1237
    %v1239 = vpop.f32.mrb[0].mxu0
    %v1240 = vadd.f32 %v592, %v1239
    %1241 = vmatprep.mubr.bf16.mxu0 0
    %1242 = vmatmul.mubr.bf16.gmra.mrb[0].mxu0 %v784
    %v1243 = vpop.f32.mrb[0].mxu0
    %v1244 = vadd.f32 %v596, %v1243
    %v1245 = vpop.f32.mrb[0].mxu0
    %v1246 = vadd.f32 %v598, %v1245
    %v1247 = vpop.f32.mrb[0].mxu0
    %v1248 = vadd.f32 %v600, %v1247
    %v1249 = vpop.f32.mrb[0].mxu0
    %v1250 = vadd.f32 %v602, %v1249
    %1251 = vmatprep.mubr.bf16.mxu0 0
    %1252 = vmatmul.mubr.bf16.gmra.mrb[0].mxu0 %v787
    %v1253 = vpop.f32.mrb[0].mxu0
    %v1254 = vadd.f32 %v606, %v1253
    %v1255 = vpop.f32.mrb[0].mxu0
    %v1256 = vadd.f32 %v608, %v1255
    %v1257 = vpop.f32.mrb[0].mxu0
    %v1258 = vadd.f32 %v610, %v1257
    %v1259 = vpop.f32.mrb[0].mxu0
    %v1260 = vadd.f32 %v612, %v1259
    %1261 = vmatprep.mubr.bf16.mxu0 0
    %1262 = vmatmul.mubr.bf16.gmra.mrb[0].mxu0 %v790
    %v1263 = vpop.f32.mrb[0].mxu0
    %v1264 = vadd.f32 %v616, %v1263
    %v1265 = vpop.f32.mrb[0].mxu0
    %v1266 = vadd.f32 %v618, %v1265
    %v1267 = vpop.f32.mrb[0].mxu0
    %v1268 = vadd.f32 %v620, %v1267
    %v1269 = vpop.f32.mrb[0].mxu0
    %v1270 = vadd.f32 %v622, %v1269
    %1271 = vdwg.mxu0
    %1272 = vmatprep.subr.bf16.mxu0 %v832
    %1273 = vmatpush1.bf16.msra.mxu0 %v829
    %1274 = vmatprep.subr.bf16.mxu0 0
    %1275 = vmatpush1.bf16.msra.mxu0 0
    %1276 = vmatprep.subr.bf16.mxu0 0
    %1277 = vmatpush1.bf16.msra.mxu0 0
    %1278 = vmatprep.subr.bf16.mxu0 0
    %1279 = vmatpush1.bf16.msra.mxu0 0
    %1280 = vmatprep.subr.bf16.mxu0 0
    %1281 = vmatpush1.bf16.msra.mxu0 0
    %1282 = vmatprep.subr.bf16.mxu0 0
    %1283 = vmatpush1.bf16.msra.mxu0 0
    %1284 = vmatprep.subr.bf16.mxu0 0
    %1285 = vmatpush1.bf16.msra.mxu0 0
    %1286 = vmatprep.subr.bf16.mxu0 0
    %1287 = vmatpush1.bf16.msra.mxu0 0
    %1288 = vmatprep.subr.bf16.mxu0 0
    %1289 = vmatpush1.bf16.msra.mxu0 0
    %1290 = vmatprep.subr.bf16.mxu0 0
    %1291 = vmatpush1.bf16.msra.mxu0 0
    %1292 = vmatprep.subr.bf16.mxu0 0
    %1293 = vmatpush1.bf16.msra.mxu0 0
    %1294 = vmatprep.subr.bf16.mxu0 0
    %1295 = vmatpush1.bf16.msra.mxu0 0
    %1296 = vmatprep.subr.bf16.mxu0 0
    %1297 = vmatpush1.bf16.msra.mxu0 0
    %1298 = vmatprep.subr.bf16.mxu0 0
    %1299 = vmatpush1.bf16.msra.mxu0 0
    %1300 = vmatprep.subr.bf16.mxu0 0
    %1301 = vmatpush1.bf16.msra.mxu0 0
    %1302 = vmatprep.subr.bf16.mxu0 0
    %1303 = vmatpush1.bf16.msra.mxu0 0
    %1304 = vmatprep.mubr.bf16.mxu0 0
    %1305 = vmatmul.mubr.bf16.gmra.mrb[0].mxu0 %v781
    %v1306 = vpop.f32.mrb[0].mxu0
    %v1307 = vadd.f32 %v659, %v1306
    %v1308 = vpop.f32.mrb[0].mxu0
    %v1309 = vadd.f32 %v661, %v1308
    %v1310 = vpop.f32.mrb[0].mxu0
    %v1311 = vadd.f32 %v663, %v1310
    %v1312 = vpop.f32.mrb[0].mxu0
    %v1313 = vadd.f32 %v665, %v1312
    %1314 = vmatprep.mubr.bf16.mxu0 0
    %1315 = vmatmul.mubr.bf16.gmra.mrb[0].mxu0 %v784
    %v1316 = vpop.f32.mrb[0].mxu0
    %v1317 = vadd.f32 %v669, %v1316
    %v1318 = vpop.f32.mrb[0].mxu0
    %v1319 = vadd.f32 %v671, %v1318
    %v1320 = vpop.f32.mrb[0].mxu0
    %v1321 = vadd.f32 %v673, %v1320
    %v1322 = vpop.f32.mrb[0].mxu0
    %v1323 = vadd.f32 %v675, %v1322
    %1324 = vmatprep.mubr.bf16.mxu0 0
    %1325 = vmatmul.mubr.bf16.gmra.mrb[0].mxu0 %v787
    %v1326 = vpop.f32.mrb[0].mxu0
    %v1327 = vadd.f32 %v679, %v1326
    %v1328 = vpop.f32.mrb[0].mxu0
    %v1329 = vadd.f32 %v681, %v1328
    %v1330 = vpop.f32.mrb[0].mxu0
    %v1331 = vadd.f32 %v683, %v1330
    %v1332 = vpop.f32.mrb[0].mxu0
    %v1333 = vadd.f32 %v685, %v1332
    %1334 = vmatprep.mubr.bf16.mxu0 0
    %1335 = vmatmul.mubr.bf16.gmra.mrb[0].mxu0 %v790
    %v1336 = vpop.f32.mrb[0].mxu0
    %v1337 = vadd.f32 %v689, %v1336
    %v1338 = vpop.f32.mrb[0].mxu0
    %v1339 = vadd.f32 %v691, %v1338
    %v1340 = vpop.f32.mrb[0].mxu0
    %v1341 = vadd.f32 %v693, %v1340
    %v1342 = vpop.f32.mrb[0].mxu0
    %v1343 = vadd.f32 %v695, %v1342
    %1344 = vdwg.mxu0
    %s1345 = scalar_lea.vmem %s1, 64
    %v1346 = vld [vmem:[%s1345] sm:$0xf]
    %v1347 = vld [vmem:[%s1345 + $0x4] sm:$0xf]
    %v1348 = vld [vmem:[%s1345 + $0x8] sm:$0xf]
    %v1349 = vld [vmem:[%s1345 + $0xc] sm:$0xf]
    %v1350 = vld [vmem:[%s1345 + $0x10] sm:$0xf]
    %v1351 = vld [vmem:[%s1345 + $0x14] sm:$0xf]
    %v1352 = vld [vmem:[%s1345 + $0x18] sm:$0xf]
    %v1353 = vld [vmem:[%s1345 + $0x1c] sm:$0xf]
    %v1354 = vld [vmem:[%s0 + $0x4] sm:$0xff]
    %v1355 = vld [vmem:[%s0 + $0xc] sm:$0xff]
    %v1356 = vld [vmem:[%s0 + $0x14] sm:$0xff]
    %v1357 = vld [vmem:[%s0 + $0x1c] sm:$0xf]
    %v1366 = vunpack.c.l.b16 %v1346
    %v1367 = vunpack.c.l.b16 %v1347
    %v1368 = vunpack.c.l.b16 %v1348
    %v1369 = vunpack.c.l.b16 %v1349
    %v1370 = vunpack.c.l.b16 %v1350
    %v1371 = vunpack.c.l.b16 %v1351
    %v1372 = vunpack.c.l.b16 %v1352
    %v1373 = vunpack.c.l.b16 %v1353
    %v1374 = vpack.c.b16 %v1367, %v1366
    %v1375 = vpack.c.b16 %v1369, %v1368
    %v1376 = vpack.c.b16 %v1371, %v1370
    %v1377 = vpack.c.b16 %v1373, %v1372
    %v1382 = vcombine.high %v1354, %v1354
    %v1384 = vunpack.c.l.s4 1983009808
    %v1385 = vunpack.c.0.s8 %v1384
    %v1386 = vlaneseq
    %v1387 = vshrl.u32 %v1386, 7
    %v1388 = vsub.s32 %v1385, %v1387
    %v1389 = vrot.slane %v1354, %v1388
    %v1391 = vunpack.c.l.s4 1983009808
    %v1392 = vunpack.c.0.s8 %v1391
    %v1393 = vlaneseq
    %v1394 = vshrl.u32 %v1393, 7
    %v1395 = vsub.s32 %v1392, %v1394
    %v1396 = vrot.slane %v1382, %v1395
    %v1397 = vcombine.high %v1389, %v1389
    %v1398 = vcombine.high %v1396, %v1396
    %v1399 = vcombine.high %v1355, %v1355
    %v1401 = vunpack.c.l.s4 1983009808
    %v1402 = vunpack.c.0.s8 %v1401
    %v1403 = vlaneseq
    %v1404 = vshrl.u32 %v1403, 7
    %v1405 = vsub.s32 %v1402, %v1404
    %v1406 = vrot.slane %v1355, %v1405
    %v1408 = vunpack.c.l.s4 1983009808
    %v1409 = vunpack.c.0.s8 %v1408
    %v1410 = vlaneseq
    %v1411 = vshrl.u32 %v1410, 7
    %v1412 = vsub.s32 %v1409, %v1411
    %v1413 = vrot.slane %v1399, %v1412
    %v1414 = vcombine.high %v1406, %v1406
    %v1415 = vcombine.high %v1413, %v1413
    %v1416 = vcombine.high %v1356, %v1356
    %v1418 = vunpack.c.l.s4 1983009808
    %v1419 = vunpack.c.0.s8 %v1418
    %v1420 = vlaneseq
    %v1421 = vshrl.u32 %v1420, 7
    %v1422 = vsub.s32 %v1419, %v1421
    %v1423 = vrot.slane %v1356, %v1422
    %v1425 = vunpack.c.l.s4 1983009808
    %v1426 = vunpack.c.0.s8 %v1425
    %v1427 = vlaneseq
    %v1428 = vshrl.u32 %v1427, 7
    %v1429 = vsub.s32 %v1426, %v1428
    %v1430 = vrot.slane %v1416, %v1429
    %v1431 = vcombine.high %v1423, %v1423
    %v1432 = vcombine.high %v1430, %v1430
    %v1434 = vunpack.c.l.s4 1983009808
    %v1435 = vunpack.c.0.s8 %v1434
    %v1436 = vlaneseq
    %v1437 = vshrl.u32 %v1436, 7
    %v1438 = vsub.s32 %v1435, %v1437
    %v1439 = vrot.slane %v1357, %v1438
    %v1440 = vcombine.high %v1439, %v1439
    %v1442 = vsel %vm130, %v1374, 0
    %v1445 = vsel %vm130, %v1375, 0
    %v1448 = vsel %vm130, %v1376, 0
    %v1451 = vsel %vm130, %v1377, 0
    %v1454 = vsel %vm143, %v1389, 0
    %v1457 = vsel %vm143, %v1397, 0
    %v1460 = vsel %vm143, %v1396, 0
    %v1463 = vsel %vm143, %v1398, 0
    %v1466 = vsel %vm143, %v1406, 0
    %v1469 = vsel %vm143, %v1414, 0
    %v1472 = vsel %vm143, %v1413, 0
    %v1475 = vsel %vm143, %v1415, 0
    %v1478 = vsel %vm143, %v1423, 0
    %v1481 = vsel %vm143, %v1431, 0
    %v1484 = vsel %vm143, %v1430, 0
    %v1487 = vsel %vm143, %v1432, 0
    %v1490 = vsel %vm143, %v1439, 0
    %v1493 = vsel %vm143, %v1440, 0
    %1495 = vmatprep.subr.bf16.mxu0 %v1457
    %1496 = vmatpush1.bf16.msra.mxu0 %v1454
    %1497 = vmatprep.subr.bf16.mxu0 0
    %1498 = vmatpush1.bf16.msra.mxu0 0
    %1499 = vmatprep.subr.bf16.mxu0 0
    %1500 = vmatpush1.bf16.msra.mxu0 0
    %1501 = vmatprep.subr.bf16.mxu0 0
    %1502 = vmatpush1.bf16.msra.mxu0 0
    %1503 = vmatprep.subr.bf16.mxu0 0
    %1504 = vmatpush1.bf16.msra.mxu0 0
    %1505 = vmatprep.subr.bf16.mxu0 0
    %1506 = vmatpush1.bf16.msra.mxu0 0
    %1507 = vmatprep.subr.bf16.mxu0 0
    %1508 = vmatpush1.bf16.msra.mxu0 0
    %1509 = vmatprep.subr.bf16.mxu0 0
    %1510 = vmatpush1.bf16.msra.mxu0 0
    %1511 = vmatprep.subr.bf16.mxu0 0
    %1512 = vmatpush1.bf16.msra.mxu0 0
    %1513 = vmatprep.subr.bf16.mxu0 0
    %1514 = vmatpush1.bf16.msra.mxu0 0
    %1515 = vmatprep.subr.bf16.mxu0 0
    %1516 = vmatpush1.bf16.msra.mxu0 0
    %1517 = vmatprep.subr.bf16.mxu0 0
    %1518 = vmatpush1.bf16.msra.mxu0 0
    %1519 = vmatprep.subr.bf16.mxu0 0
    %1520 = vmatpush1.bf16.msra.mxu0 0
    %1521 = vmatprep.subr.bf16.mxu0 0
    %1522 = vmatpush1.bf16.msra.mxu0 0
    %1523 = vmatprep.subr.bf16.mxu0 0
    %1524 = vmatpush1.bf16.msra.mxu0 0
    %1525 = vmatprep.subr.bf16.mxu0 0
    %1526 = vmatpush1.bf16.msra.mxu0 0
    %1527 = vmatprep.mubr.bf16.mxu0 0
    %1528 = vmatmul.mubr.bf16.gmra.mrb[0].mxu0 %v1442
    %v1529 = vpop.f32.mrb[0].mxu0
    %v1530 = vadd.f32 0.0, %v1529
    %v1531 = vpop.f32.mrb[0].mxu0
    %v1532 = vadd.f32 0.0, %v1531
    %v1533 = vpop.f32.mrb[0].mxu0
    %v1534 = vadd.f32 0.0, %v1533
    %v1535 = vpop.f32.mrb[0].mxu0
    %v1536 = vadd.f32 0.0, %v1535
    %1537 = vmatprep.mubr.bf16.mxu0 0
    %1538 = vmatmul.mubr.bf16.gmra.mrb[0].mxu0 %v1445
    %v1539 = vpop.f32.mrb[0].mxu0
    %v1540 = vadd.f32 0.0, %v1539
    %v1541 = vpop.f32.mrb[0].mxu0
    %v1542 = vadd.f32 0.0, %v1541
    %v1543 = vpop.f32.mrb[0].mxu0
    %v1544 = vadd.f32 0.0, %v1543
    %v1545 = vpop.f32.mrb[0].mxu0
    %v1546 = vadd.f32 0.0, %v1545
    %1547 = vmatprep.mubr.bf16.mxu0 0
    %1548 = vmatmul.mubr.bf16.gmra.mrb[0].mxu0 %v1448
    %v1549 = vpop.f32.mrb[0].mxu0
    %v1550 = vadd.f32 0.0, %v1549
    %v1551 = vpop.f32.mrb[0].mxu0
    %v1552 = vadd.f32 0.0, %v1551
    %v1553 = vpop.f32.mrb[0].mxu0
    %v1554 = vadd.f32 0.0, %v1553
    %v1555 = vpop.f32.mrb[0].mxu0
    %v1556 = vadd.f32 0.0, %v1555
    %1557 = vmatprep.mubr.bf16.mxu0 0
    %1558 = vmatmul.mubr.bf16.gmra.mrb[0].mxu0 %v1451
    %v1559 = vpop.f32.mrb[0].mxu0
    %v1560 = vadd.f32 0.0, %v1559
    %v1561 = vpop.f32.mrb[0].mxu0
    %v1562 = vadd.f32 0.0, %v1561
    %v1563 = vpop.f32.mrb[0].mxu0
    %v1564 = vadd.f32 0.0, %v1563
    %v1565 = vpop.f32.mrb[0].mxu0
    %v1566 = vadd.f32 0.0, %v1565
    %1567 = vdwg.mxu0
    %1568 = vmatprep.subr.bf16.mxu0 %v1463
    %1569 = vmatpush1.bf16.msra.mxu0 %v1460
    %1570 = vmatprep.subr.bf16.mxu0 0
    %1571 = vmatpush1.bf16.msra.mxu0 0
    %1572 = vmatprep.subr.bf16.mxu0 0
    %1573 = vmatpush1.bf16.msra.mxu0 0
    %1574 = vmatprep.subr.bf16.mxu0 0
    %1575 = vmatpush1.bf16.msra.mxu0 0
    %1576 = vmatprep.subr.bf16.mxu0 0
    %1577 = vmatpush1.bf16.msra.mxu0 0
    %1578 = vmatprep.subr.bf16.mxu0 0
    %1579 = vmatpush1.bf16.msra.mxu0 0
    %1580 = vmatprep.subr.bf16.mxu0 0
    %1581 = vmatpush1.bf16.msra.mxu0 0
    %1582 = vmatprep.subr.bf16.mxu0 0
    %1583 = vmatpush1.bf16.msra.mxu0 0
    %1584 = vmatprep.subr.bf16.mxu0 0
    %1585 = vmatpush1.bf16.msra.mxu0 0
    %1586 = vmatprep.subr.bf16.mxu0 0
    %1587 = vmatpush1.bf16.msra.mxu0 0
    %1588 = vmatprep.subr.bf16.mxu0 0
    %1589 = vmatpush1.bf16.msra.mxu0 0
    %1590 = vmatprep.subr.bf16.mxu0 0
    %1591 = vmatpush1.bf16.msra.mxu0 0
    %1592 = vmatprep.subr.bf16.mxu0 0
    %1593 = vmatpush1.bf16.msra.mxu0 0
    %1594 = vmatprep.subr.bf16.mxu0 0
    %1595 = vmatpush1.bf16.msra.mxu0 0
    %1596 = vmatprep.subr.bf16.mxu0 0
    %1597 = vmatpush1.bf16.msra.mxu0 0
    %1598 = vmatprep.subr.bf16.mxu0 0
    %1599 = vmatpush1.bf16.msra.mxu0 0
    %1600 = vmatprep.mubr.bf16.mxu0 0
    %1601 = vmatmul.mubr.bf16.gmra.mrb[0].mxu0 %v1442
    %v1602 = vpop.f32.mrb[0].mxu0
    %v1603 = vadd.f32 0.0, %v1602
    %v1604 = vpop.f32.mrb[0].mxu0
    %v1605 = vadd.f32 0.0, %v1604
    %v1606 = vpop.f32.mrb[0].mxu0
    %v1607 = vadd.f32 0.0, %v1606
    %v1608 = vpop.f32.mrb[0].mxu0
    %v1609 = vadd.f32 0.0, %v1608
    %1610 = vmatprep.mubr.bf16.mxu0 0
    %1611 = vmatmul.mubr.bf16.gmra.mrb[0].mxu0 %v1445
    %v1612 = vpop.f32.mrb[0].mxu0
    %v1613 = vadd.f32 0.0, %v1612
    %v1614 = vpop.f32.mrb[0].mxu0
    %v1615 = vadd.f32 0.0, %v1614
    %v1616 = vpop.f32.mrb[0].mxu0
    %v1617 = vadd.f32 0.0, %v1616
    %v1618 = vpop.f32.mrb[0].mxu0
    %v1619 = vadd.f32 0.0, %v1618
    %1620 = vmatprep.mubr.bf16.mxu0 0
    %1621 = vmatmul.mubr.bf16.gmra.mrb[0].mxu0 %v1448
    %v1622 = vpop.f32.mrb[0].mxu0
    %v1623 = vadd.f32 0.0, %v1622
    %v1624 = vpop.f32.mrb[0].mxu0
    %v1625 = vadd.f32 0.0, %v1624
    %v1626 = vpop.f32.mrb[0].mxu0
    %v1627 = vadd.f32 0.0, %v1626
    %v1628 = vpop.f32.mrb[0].mxu0
    %v1629 = vadd.f32 0.0, %v1628
    %1630 = vmatprep.mubr.bf16.mxu0 0
    %1631 = vmatmul.mubr.bf16.gmra.mrb[0].mxu0 %v1451
    %v1632 = vpop.f32.mrb[0].mxu0
    %v1633 = vadd.f32 0.0, %v1632
    %v1634 = vpop.f32.mrb[0].mxu0
    %v1635 = vadd.f32 0.0, %v1634
    %v1636 = vpop.f32.mrb[0].mxu0
    %v1637 = vadd.f32 0.0, %v1636
    %v1638 = vpop.f32.mrb[0].mxu0
    %v1639 = vadd.f32 0.0, %v1638
    %1640 = vdwg.mxu0
    %1641 = vmatprep.subr.bf16.mxu0 %v1469
    %1642 = vmatpush1.bf16.msra.mxu0 %v1466
    %1643 = vmatprep.subr.bf16.mxu0 0
    %1644 = vmatpush1.bf16.msra.mxu0 0
    %1645 = vmatprep.subr.bf16.mxu0 0
    %1646 = vmatpush1.bf16.msra.mxu0 0
    %1647 = vmatprep.subr.bf16.mxu0 0
    %1648 = vmatpush1.bf16.msra.mxu0 0
    %1649 = vmatprep.subr.bf16.mxu0 0
    %1650 = vmatpush1.bf16.msra.mxu0 0
    %1651 = vmatprep.subr.bf16.mxu0 0
    %1652 = vmatpush1.bf16.msra.mxu0 0
    %1653 = vmatprep.subr.bf16.mxu0 0
    %1654 = vmatpush1.bf16.msra.mxu0 0
    %1655 = vmatprep.subr.bf16.mxu0 0
    %1656 = vmatpush1.bf16.msra.mxu0 0
    %1657 = vmatprep.subr.bf16.mxu0 0
    %1658 = vmatpush1.bf16.msra.mxu0 0
    %1659 = vmatprep.subr.bf16.mxu0 0
    %1660 = vmatpush1.bf16.msra.mxu0 0
    %1661 = vmatprep.subr.bf16.mxu0 0
    %1662 = vmatpush1.bf16.msra.mxu0 0
    %1663 = vmatprep.subr.bf16.mxu0 0
    %1664 = vmatpush1.bf16.msra.mxu0 0
    %1665 = vmatprep.subr.bf16.mxu0 0
    %1666 = vmatpush1.bf16.msra.mxu0 0
    %1667 = vmatprep.subr.bf16.mxu0 0
    %1668 = vmatpush1.bf16.msra.mxu0 0
    %1669 = vmatprep.subr.bf16.mxu0 0
    %1670 = vmatpush1.bf16.msra.mxu0 0
    %1671 = vmatprep.subr.bf16.mxu0 0
    %1672 = vmatpush1.bf16.msra.mxu0 0
    %1673 = vmatprep.mubr.bf16.mxu0 0
    %1674 = vmatmul.mubr.bf16.gmra.mrb[0].mxu0 %v1442
    %v1675 = vpop.f32.mrb[0].mxu0
    %v1676 = vadd.f32 0.0, %v1675
    %v1677 = vpop.f32.mrb[0].mxu0
    %v1678 = vadd.f32 0.0, %v1677
    %v1679 = vpop.f32.mrb[0].mxu0
    %v1680 = vadd.f32 0.0, %v1679
    %v1681 = vpop.f32.mrb[0].mxu0
    %v1682 = vadd.f32 0.0, %v1681
    %1683 = vmatprep.mubr.bf16.mxu0 0
    %1684 = vmatmul.mubr.bf16.gmra.mrb[0].mxu0 %v1445
    %v1685 = vpop.f32.mrb[0].mxu0
    %v1686 = vadd.f32 0.0, %v1685
    %v1687 = vpop.f32.mrb[0].mxu0
    %v1688 = vadd.f32 0.0, %v1687
    %v1689 = vpop.f32.mrb[0].mxu0
    %v1690 = vadd.f32 0.0, %v1689
    %v1691 = vpop.f32.mrb[0].mxu0
    %v1692 = vadd.f32 0.0, %v1691
    %1693 = vmatprep.mubr.bf16.mxu0 0
    %1694 = vmatmul.mubr.bf16.gmra.mrb[0].mxu0 %v1448
    %v1695 = vpop.f32.mrb[0].mxu0
    %v1696 = vadd.f32 0.0, %v1695
    %v1697 = vpop.f32.mrb[0].mxu0
    %v1698 = vadd.f32 0.0, %v1697
    %v1699 = vpop.f32.mrb[0].mxu0
    %v1700 = vadd.f32 0.0, %v1699
    %v1701 = vpop.f32.mrb[0].mxu0
    %v1702 = vadd.f32 0.0, %v1701
    %1703 = vmatprep.mubr.bf16.mxu0 0
    %1704 = vmatmul.mubr.bf16.gmra.mrb[0].mxu0 %v1451
    %v1705 = vpop.f32.mrb[0].mxu0
    %v1706 = vadd.f32 0.0, %v1705
    %v1707 = vpop.f32.mrb[0].mxu0
    %v1708 = vadd.f32 0.0, %v1707
    %v1709 = vpop.f32.mrb[0].mxu0
    %v1710 = vadd.f32 0.0, %v1709
    %v1711 = vpop.f32.mrb[0].mxu0
    %v1712 = vadd.f32 0.0, %v1711
    %1713 = vdwg.mxu0
    %1714 = vmatprep.subr.bf16.mxu0 %v1475
    %1715 = vmatpush1.bf16.msra.mxu0 %v1472
    %1716 = vmatprep.subr.bf16.mxu0 0
    %1717 = vmatpush1.bf16.msra.mxu0 0
    %1718 = vmatprep.subr.bf16.mxu0 0
    %1719 = vmatpush1.bf16.msra.mxu0 0
    %1720 = vmatprep.subr.bf16.mxu0 0
    %1721 = vmatpush1.bf16.msra.mxu0 0
    %1722 = vmatprep.subr.bf16.mxu0 0
    %1723 = vmatpush1.bf16.msra.mxu0 0
    %1724 = vmatprep.subr.bf16.mxu0 0
    %1725 = vmatpush1.bf16.msra.mxu0 0
    %1726 = vmatprep.subr.bf16.mxu0 0
    %1727 = vmatpush1.bf16.msra.mxu0 0
    %1728 = vmatprep.subr.bf16.mxu0 0
    %1729 = vmatpush1.bf16.msra.mxu0 0
    %1730 = vmatprep.subr.bf16.mxu0 0
    %1731 = vmatpush1.bf16.msra.mxu0 0
    %1732 = vmatprep.subr.bf16.mxu0 0
    %1733 = vmatpush1.bf16.msra.mxu0 0
    %1734 = vmatprep.subr.bf16.mxu0 0
    %1735 = vmatpush1.bf16.msra.mxu0 0
    %1736 = vmatprep.subr.bf16.mxu0 0
    %1737 = vmatpush1.bf16.msra.mxu0 0
    %1738 = vmatprep.subr.bf16.mxu0 0
    %1739 = vmatpush1.bf16.msra.mxu0 0
    %1740 = vmatprep.subr.bf16.mxu0 0
    %1741 = vmatpush1.bf16.msra.mxu0 0
    %1742 = vmatprep.subr.bf16.mxu0 0
    %1743 = vmatpush1.bf16.msra.mxu0 0
    %1744 = vmatprep.subr.bf16.mxu0 0
    %1745 = vmatpush1.bf16.msra.mxu0 0
    %1746 = vmatprep.mubr.bf16.mxu0 0
    %1747 = vmatmul.mubr.bf16.gmra.mrb[0].mxu0 %v1442
    %v1748 = vpop.f32.mrb[0].mxu0
    %v1749 = vadd.f32 0.0, %v1748
    %v1750 = vpop.f32.mrb[0].mxu0
    %v1751 = vadd.f32 0.0, %v1750
    %v1752 = vpop.f32.mrb[0].mxu0
    %v1753 = vadd.f32 0.0, %v1752
    %v1754 = vpop.f32.mrb[0].mxu0
    %v1755 = vadd.f32 0.0, %v1754
    %1756 = vmatprep.mubr.bf16.mxu0 0
    %1757 = vmatmul.mubr.bf16.gmra.mrb[0].mxu0 %v1445
    %v1758 = vpop.f32.mrb[0].mxu0
    %v1759 = vadd.f32 0.0, %v1758
    %v1760 = vpop.f32.mrb[0].mxu0
    %v1761 = vadd.f32 0.0, %v1760
    %v1762 = vpop.f32.mrb[0].mxu0
    %v1763 = vadd.f32 0.0, %v1762
    %v1764 = vpop.f32.mrb[0].mxu0
    %v1765 = vadd.f32 0.0, %v1764
    %1766 = vmatprep.mubr.bf16.mxu0 0
    %1767 = vmatmul.mubr.bf16.gmra.mrb[0].mxu0 %v1448
    %v1768 = vpop.f32.mrb[0].mxu0
    %v1769 = vadd.f32 0.0, %v1768
    %v1770 = vpop.f32.mrb[0].mxu0
    %v1771 = vadd.f32 0.0, %v1770
    %v1772 = vpop.f32.mrb[0].mxu0
    %v1773 = vadd.f32 0.0, %v1772
    %v1774 = vpop.f32.mrb[0].mxu0
    %v1775 = vadd.f32 0.0, %v1774
    %1776 = vmatprep.mubr.bf16.mxu0 0
    %1777 = vmatmul.mubr.bf16.gmra.mrb[0].mxu0 %v1451
    %v1778 = vpop.f32.mrb[0].mxu0
    %v1779 = vadd.f32 0.0, %v1778
    %v1780 = vpop.f32.mrb[0].mxu0
    %v1781 = vadd.f32 0.0, %v1780
    %v1782 = vpop.f32.mrb[0].mxu0
    %v1783 = vadd.f32 0.0, %v1782
    %v1784 = vpop.f32.mrb[0].mxu0
    %v1785 = vadd.f32 0.0, %v1784
    %1786 = vdwg.mxu0
    %1787 = vmatprep.subr.bf16.mxu0 %v1481
    %1788 = vmatpush1.bf16.msra.mxu0 %v1478
    %1789 = vmatprep.subr.bf16.mxu0 0
    %1790 = vmatpush1.bf16.msra.mxu0 0
    %1791 = vmatprep.subr.bf16.mxu0 0
    %1792 = vmatpush1.bf16.msra.mxu0 0
    %1793 = vmatprep.subr.bf16.mxu0 0
    %1794 = vmatpush1.bf16.msra.mxu0 0
    %1795 = vmatprep.subr.bf16.mxu0 0
    %1796 = vmatpush1.bf16.msra.mxu0 0
    %1797 = vmatprep.subr.bf16.mxu0 0
    %1798 = vmatpush1.bf16.msra.mxu0 0
    %1799 = vmatprep.subr.bf16.mxu0 0
    %1800 = vmatpush1.bf16.msra.mxu0 0
    %1801 = vmatprep.subr.bf16.mxu0 0
    %1802 = vmatpush1.bf16.msra.mxu0 0
    %1803 = vmatprep.subr.bf16.mxu0 0
    %1804 = vmatpush1.bf16.msra.mxu0 0
    %1805 = vmatprep.subr.bf16.mxu0 0
    %1806 = vmatpush1.bf16.msra.mxu0 0
    %1807 = vmatprep.subr.bf16.mxu0 0
    %1808 = vmatpush1.bf16.msra.mxu0 0
    %1809 = vmatprep.subr.bf16.mxu0 0
    %1810 = vmatpush1.bf16.msra.mxu0 0
    %1811 = vmatprep.subr.bf16.mxu0 0
    %1812 = vmatpush1.bf16.msra.mxu0 0
    %1813 = vmatprep.subr.bf16.mxu0 0
    %1814 = vmatpush1.bf16.msra.mxu0 0
    %1815 = vmatprep.subr.bf16.mxu0 0
    %1816 = vmatpush1.bf16.msra.mxu0 0
    %1817 = vmatprep.subr.bf16.mxu0 0
    %1818 = vmatpush1.bf16.msra.mxu0 0
    %1819 = vmatprep.mubr.bf16.mxu0 0
    %1820 = vmatmul.mubr.bf16.gmra.mrb[0].mxu0 %v1442
    %v1821 = vpop.f32.mrb[0].mxu0
    %v1822 = vadd.f32 0.0, %v1821
    %v1823 = vpop.f32.mrb[0].mxu0
    %v1824 = vadd.f32 0.0, %v1823
    %v1825 = vpop.f32.mrb[0].mxu0
    %v1826 = vadd.f32 0.0, %v1825
    %v1827 = vpop.f32.mrb[0].mxu0
    %v1828 = vadd.f32 0.0, %v1827
    %1829 = vmatprep.mubr.bf16.mxu0 0
    %1830 = vmatmul.mubr.bf16.gmra.mrb[0].mxu0 %v1445
    %v1831 = vpop.f32.mrb[0].mxu0
    %v1832 = vadd.f32 0.0, %v1831
    %v1833 = vpop.f32.mrb[0].mxu0
    %v1834 = vadd.f32 0.0, %v1833
    %v1835 = vpop.f32.mrb[0].mxu0
    %v1836 = vadd.f32 0.0, %v1835
    %v1837 = vpop.f32.mrb[0].mxu0
    %v1838 = vadd.f32 0.0, %v1837
    %1839 = vmatprep.mubr.bf16.mxu0 0
    %1840 = vmatmul.mubr.bf16.gmra.mrb[0].mxu0 %v1448
    %v1841 = vpop.f32.mrb[0].mxu0
    %v1842 = vadd.f32 0.0, %v1841
    %v1843 = vpop.f32.mrb[0].mxu0
    %v1844 = vadd.f32 0.0, %v1843
    %v1845 = vpop.f32.mrb[0].mxu0
    %v1846 = vadd.f32 0.0, %v1845
    %v1847 = vpop.f32.mrb[0].mxu0
    %v1848 = vadd.f32 0.0, %v1847
    %1849 = vmatprep.mubr.bf16.mxu0 0
    %1850 = vmatmul.mubr.bf16.gmra.mrb[0].mxu0 %v1451
    %v1851 = vpop.f32.mrb[0].mxu0
    %v1852 = vadd.f32 0.0, %v1851
    %v1853 = vpop.f32.mrb[0].mxu0
    %v1854 = vadd.f32 0.0, %v1853
    %v1855 = vpop.f32.mrb[0].mxu0
    %v1856 = vadd.f32 0.0, %v1855
    %v1857 = vpop.f32.mrb[0].mxu0
    %v1858 = vadd.f32 0.0, %v1857
    %1859 = vdwg.mxu0
    %1860 = vmatprep.subr.bf16.mxu0 %v1487
    %1861 = vmatpush1.bf16.msra.mxu0 %v1484
    %1862 = vmatprep.subr.bf16.mxu0 0
    %1863 = vmatpush1.bf16.msra.mxu0 0
    %1864 = vmatprep.subr.bf16.mxu0 0
    %1865 = vmatpush1.bf16.msra.mxu0 0
    %1866 = vmatprep.subr.bf16.mxu0 0
    %1867 = vmatpush1.bf16.msra.mxu0 0
    %1868 = vmatprep.subr.bf16.mxu0 0
    %1869 = vmatpush1.bf16.msra.mxu0 0
    %1870 = vmatprep.subr.bf16.mxu0 0
    %1871 = vmatpush1.bf16.msra.mxu0 0
    %1872 = vmatprep.subr.bf16.mxu0 0
    %1873 = vmatpush1.bf16.msra.mxu0 0
    %1874 = vmatprep.subr.bf16.mxu0 0
    %1875 = vmatpush1.bf16.msra.mxu0 0
    %1876 = vmatprep.subr.bf16.mxu0 0
    %1877 = vmatpush1.bf16.msra.mxu0 0
    %1878 = vmatprep.subr.bf16.mxu0 0
    %1879 = vmatpush1.bf16.msra.mxu0 0
    %1880 = vmatprep.subr.bf16.mxu0 0
    %1881 = vmatpush1.bf16.msra.mxu0 0
    %1882 = vmatprep.subr.bf16.mxu0 0
    %1883 = vmatpush1.bf16.msra.mxu0 0
    %1884 = vmatprep.subr.bf16.mxu0 0
    %1885 = vmatpush1.bf16.msra.mxu0 0
    %1886 = vmatprep.subr.bf16.mxu0 0
    %1887 = vmatpush1.bf16.msra.mxu0 0
    %1888 = vmatprep.subr.bf16.mxu0 0
    %1889 = vmatpush1.bf16.msra.mxu0 0
    %1890 = vmatprep.subr.bf16.mxu0 0
    %1891 = vmatpush1.bf16.msra.mxu0 0
    %1892 = vmatprep.mubr.bf16.mxu0 0
    %1893 = vmatmul.mubr.bf16.gmra.mrb[0].mxu0 %v1442
    %v1894 = vpop.f32.mrb[0].mxu0
    %v1895 = vadd.f32 0.0, %v1894
    %v1896 = vpop.f32.mrb[0].mxu0
    %v1897 = vadd.f32 0.0, %v1896
    %v1898 = vpop.f32.mrb[0].mxu0
    %v1899 = vadd.f32 0.0, %v1898
    %v1900 = vpop.f32.mrb[0].mxu0
    %v1901 = vadd.f32 0.0, %v1900
    %1902 = vmatprep.mubr.bf16.mxu0 0
    %1903 = vmatmul.mubr.bf16.gmra.mrb[0].mxu0 %v1445
    %v1904 = vpop.f32.mrb[0].mxu0
    %v1905 = vadd.f32 0.0, %v1904
    %v1906 = vpop.f32.mrb[0].mxu0
    %v1907 = vadd.f32 0.0, %v1906
    %v1908 = vpop.f32.mrb[0].mxu0
    %v1909 = vadd.f32 0.0, %v1908
    %v1910 = vpop.f32.mrb[0].mxu0
    %v1911 = vadd.f32 0.0, %v1910
    %1912 = vmatprep.mubr.bf16.mxu0 0
    %1913 = vmatmul.mubr.bf16.gmra.mrb[0].mxu0 %v1448
    %v1914 = vpop.f32.mrb[0].mxu0
    %v1915 = vadd.f32 0.0, %v1914
    %v1916 = vpop.f32.mrb[0].mxu0
    %v1917 = vadd.f32 0.0, %v1916
    %v1918 = vpop.f32.mrb[0].mxu0
    %v1919 = vadd.f32 0.0, %v1918
    %v1920 = vpop.f32.mrb[0].mxu0
    %v1921 = vadd.f32 0.0, %v1920
    %1922 = vmatprep.mubr.bf16.mxu0 0
    %1923 = vmatmul.mubr.bf16.gmra.mrb[0].mxu0 %v1451
    %v1924 = vpop.f32.mrb[0].mxu0
    %v1925 = vadd.f32 0.0, %v1924
    %v1926 = vpop.f32.mrb[0].mxu0
    %v1927 = vadd.f32 0.0, %v1926
    %v1928 = vpop.f32.mrb[0].mxu0
    %v1929 = vadd.f32 0.0, %v1928
    %v1930 = vpop.f32.mrb[0].mxu0
    %v1931 = vadd.f32 0.0, %v1930
    %1932 = vdwg.mxu0
    %1933 = vmatprep.subr.bf16.mxu0 %v1493
    %1934 = vmatpush1.bf16.msra.mxu0 %v1490
    %1935 = vmatprep.subr.bf16.mxu0 0
    %1936 = vmatpush1.bf16.msra.mxu0 0
    %1937 = vmatprep.subr.bf16.mxu0 0
    %1938 = vmatpush1.bf16.msra.mxu0 0
    %1939 = vmatprep.subr.bf16.mxu0 0
    %1940 = vmatpush1.bf16.msra.mxu0 0
    %1941 = vmatprep.subr.bf16.mxu0 0
    %1942 = vmatpush1.bf16.msra.mxu0 0
    %1943 = vmatprep.subr.bf16.mxu0 0
    %1944 = vmatpush1.bf16.msra.mxu0 0
    %1945 = vmatprep.subr.bf16.mxu0 0
    %1946 = vmatpush1.bf16.msra.mxu0 0
    %1947 = vmatprep.subr.bf16.mxu0 0
    %1948 = vmatpush1.bf16.msra.mxu0 0
    %1949 = vmatprep.subr.bf16.mxu0 0
    %1950 = vmatpush1.bf16.msra.mxu0 0
    %1951 = vmatprep.subr.bf16.mxu0 0
    %1952 = vmatpush1.bf16.msra.mxu0 0
    %1953 = vmatprep.subr.bf16.mxu0 0
    %1954 = vmatpush1.bf16.msra.mxu0 0
    %1955 = vmatprep.subr.bf16.mxu0 0
    %1956 = vmatpush1.bf16.msra.mxu0 0
    %1957 = vmatprep.subr.bf16.mxu0 0
    %1958 = vmatpush1.bf16.msra.mxu0 0
    %1959 = vmatprep.subr.bf16.mxu0 0
    %1960 = vmatpush1.bf16.msra.mxu0 0
    %1961 = vmatprep.subr.bf16.mxu0 0
    %1962 = vmatpush1.bf16.msra.mxu0 0
    %1963 = vmatprep.subr.bf16.mxu0 0
    %1964 = vmatpush1.bf16.msra.mxu0 0
    %1965 = vmatprep.mubr.bf16.mxu0 0
    %1966 = vmatmul.mubr.bf16.gmra.mrb[0].mxu0 %v1442
    %v1967 = vpop.f32.mrb[0].mxu0
    %v1968 = vadd.f32 0.0, %v1967
    %v1969 = vpop.f32.mrb[0].mxu0
    %v1970 = vadd.f32 0.0, %v1969
    %v1971 = vpop.f32.mrb[0].mxu0
    %v1972 = vadd.f32 0.0, %v1971
    %v1973 = vpop.f32.mrb[0].mxu0
    %v1974 = vadd.f32 0.0, %v1973
    %1975 = vmatprep.mubr.bf16.mxu0 0
    %1976 = vmatmul.mubr.bf16.gmra.mrb[0].mxu0 %v1445
    %v1977 = vpop.f32.mrb[0].mxu0
    %v1978 = vadd.f32 0.0, %v1977
    %v1979 = vpop.f32.mrb[0].mxu0
    %v1980 = vadd.f32 0.0, %v1979
    %v1981 = vpop.f32.mrb[0].mxu0
    %v1982 = vadd.f32 0.0, %v1981
    %v1983 = vpop.f32.mrb[0].mxu0
    %v1984 = vadd.f32 0.0, %v1983
    %1985 = vmatprep.mubr.bf16.mxu0 0
    %1986 = vmatmul.mubr.bf16.gmra.mrb[0].mxu0 %v1448
    %v1987 = vpop.f32.mrb[0].mxu0
    %v1988 = vadd.f32 0.0, %v1987
    %v1989 = vpop.f32.mrb[0].mxu0
    %v1990 = vadd.f32 0.0, %v1989
    %v1991 = vpop.f32.mrb[0].mxu0
    %v1992 = vadd.f32 0.0, %v1991
    %v1993 = vpop.f32.mrb[0].mxu0
    %v1994 = vadd.f32 0.0, %v1993
    %1995 = vmatprep.mubr.bf16.mxu0 0
    %1996 = vmatmul.mubr.bf16.gmra.mrb[0].mxu0 %v1451
    %v1997 = vpop.f32.mrb[0].mxu0
    %v1998 = vadd.f32 0.0, %v1997
    %v1999 = vpop.f32.mrb[0].mxu0
    %v2000 = vadd.f32 0.0, %v1999
    %v2001 = vpop.f32.mrb[0].mxu0
    %v2002 = vadd.f32 0.0, %v2001
    %v2003 = vpop.f32.mrb[0].mxu0
    %v2004 = vadd.f32 0.0, %v2003
    %2005 = vdwg.mxu0
    %v2006 = vadd.f32 %v869, %v1530
    %v2007 = vadd.f32 %v871, %v1532
    %v2008 = vadd.f32 %v942, %v1603
    %v2009 = vadd.f32 %v944, %v1605
    %v2010 = vadd.f32 %v1015, %v1676
    %v2011 = vadd.f32 %v1017, %v1678
    %v2012 = vadd.f32 %v1088, %v1749
    %v2013 = vadd.f32 %v1090, %v1751
    %v2014 = vadd.f32 %v1161, %v1822
    %v2015 = vadd.f32 %v1163, %v1824
    %v2016 = vadd.f32 %v1234, %v1895
    %v2017 = vadd.f32 %v1236, %v1897
    %v2018 = vadd.f32 %v1307, %v1968
    %v2019 = vadd.f32 %v1309, %v1970
    %v2020 = vadd.f32 %v873, %v1534
    %v2021 = vadd.f32 %v875, %v1536
    %v2022 = vadd.f32 %v946, %v1607
    %v2023 = vadd.f32 %v948, %v1609
    %v2024 = vadd.f32 %v1019, %v1680
    %v2025 = vadd.f32 %v1021, %v1682
    %v2026 = vadd.f32 %v1092, %v1753
    %v2027 = vadd.f32 %v1094, %v1755
    %v2028 = vadd.f32 %v1165, %v1826
    %v2029 = vadd.f32 %v1167, %v1828
    %v2030 = vadd.f32 %v1238, %v1899
    %v2031 = vadd.f32 %v1240, %v1901
    %v2032 = vadd.f32 %v1311, %v1972
    %v2033 = vadd.f32 %v1313, %v1974
    %v2034 = vadd.f32 %v879, %v1540
    %v2035 = vadd.f32 %v881, %v1542
    %v2036 = vadd.f32 %v952, %v1613
    %v2037 = vadd.f32 %v954, %v1615
    %v2038 = vadd.f32 %v1025, %v1686
    %v2039 = vadd.f32 %v1027, %v1688
    %v2040 = vadd.f32 %v1098, %v1759
    %v2041 = vadd.f32 %v1100, %v1761
    %v2042 = vadd.f32 %v1171, %v1832
    %v2043 = vadd.f32 %v1173, %v1834
    %v2044 = vadd.f32 %v1244, %v1905
    %v2045 = vadd.f32 %v1246, %v1907
    %v2046 = vadd.f32 %v1317, %v1978
    %v2047 = vadd.f32 %v1319, %v1980
    %v2048 = vadd.f32 %v883, %v1544
    %v2049 = vadd.f32 %v885, %v1546
    %v2050 = vadd.f32 %v956, %v1617
    %v2051 = vadd.f32 %v958, %v1619
    %v2052 = vadd.f32 %v1029, %v1690
    %v2053 = vadd.f32 %v1031, %v1692
    %v2054 = vadd.f32 %v1102, %v1763
    %v2055 = vadd.f32 %v1104, %v1765
    %v2056 = vadd.f32 %v1175, %v1836
    %v2057 = vadd.f32 %v1177, %v1838
    %v2058 = vadd.f32 %v1248, %v1909
    %v2059 = vadd.f32 %v1250, %v1911
    %v2060 = vadd.f32 %v1321, %v1982
    %v2061 = vadd.f32 %v1323, %v1984
    %v2062 = vadd.f32 %v889, %v1550
    %v2063 = vadd.f32 %v891, %v1552
    %v2064 = vadd.f32 %v962, %v1623
    %v2065 = vadd.f32 %v964, %v1625
    %v2066 = vadd.f32 %v1035, %v1696
    %v2067 = vadd.f32 %v1037, %v1698
    %v2068 = vadd.f32 %v1108, %v1769
    %v2069 = vadd.f32 %v1110, %v1771
    %v2070 = vadd.f32 %v1181, %v1842
    %v2071 = vadd.f32 %v1183, %v1844
    %v2072 = vadd.f32 %v1254, %v1915
    %v2073 = vadd.f32 %v1256, %v1917
    %v2074 = vadd.f32 %v1327, %v1988
    %v2075 = vadd.f32 %v1329, %v1990
    %v2076 = vadd.f32 %v893, %v1554
    %v2077 = vadd.f32 %v895, %v1556
    %v2078 = vadd.f32 %v966, %v1627
    %v2079 = vadd.f32 %v968, %v1629
    %v2080 = vadd.f32 %v1039, %v1700
    %v2081 = vadd.f32 %v1041, %v1702
    %v2082 = vadd.f32 %v1112, %v1773
    %v2083 = vadd.f32 %v1114, %v1775
    %v2084 = vadd.f32 %v1185, %v1846
    %v2085 = vadd.f32 %v1187, %v1848
    %v2086 = vadd.f32 %v1258, %v1919
    %v2087 = vadd.f32 %v1260, %v1921
    %v2088 = vadd.f32 %v1331, %v1992
    %v2089 = vadd.f32 %v1333, %v1994
    %v2090 = vadd.f32 %v899, %v1560
    %v2091 = vadd.f32 %v901, %v1562
    %v2092 = vadd.f32 %v972, %v1633
    %v2093 = vadd.f32 %v974, %v1635
    %v2094 = vadd.f32 %v1045, %v1706
    %v2095 = vadd.f32 %v1047, %v1708
    %v2096 = vadd.f32 %v1118, %v1779
    %v2097 = vadd.f32 %v1120, %v1781
    %v2098 = vadd.f32 %v1191, %v1852
    %v2099 = vadd.f32 %v1193, %v1854
    %v2100 = vadd.f32 %v1264, %v1925
    %v2101 = vadd.f32 %v1266, %v1927
    %v2102 = vadd.f32 %v1337, %v1998
    %v2103 = vadd.f32 %v1339, %v2000
    %v2104 = vadd.f32 %v903, %v1564
    %v2105 = vadd.f32 %v905, %v1566
    %v2106 = vadd.f32 %v976, %v1637
    %v2107 = vadd.f32 %v978, %v1639
    %v2108 = vadd.f32 %v1049, %v1710
    %v2109 = vadd.f32 %v1051, %v1712
    %v2110 = vadd.f32 %v1122, %v1783
    %v2111 = vadd.f32 %v1124, %v1785
    %v2112 = vadd.f32 %v1195, %v1856
    %v2113 = vadd.f32 %v1197, %v1858
    %v2114 = vadd.f32 %v1268, %v1929
    %v2115 = vadd.f32 %v1270, %v1931
    %v2116 = vadd.f32 %v1341, %v2002
    %v2117 = vadd.f32 %v1343, %v2004
    %v2118 = vld [vmem:[%s2] sm:$0xff]
    %v2119 = vld [vmem:[%s2 + $0x8] sm:$0xff]
    %v2120 = vld [vmem:[%s2 + $0x10] sm:$0xff]
    %v2121 = vld [vmem:[%s2 + $0x18] sm:$0xff]
    %v2122 = vld [vmem:[%s2 + $0x20] sm:$0xff]
    %v2123 = vld [vmem:[%s2 + $0x28] sm:$0xff]
    %v2124 = vld [vmem:[%s2 + $0x30] sm:$0xff]
    %v2125 = vld [vmem:[%s2 + $0x38] sm:$0xff]
    %2127 = vset.pattern.permute.xlu0 0
    %2128 = vperm.xlu0 %2127, %v2118
    %v2129 = vpop.permute.xlu0 %2128
    %2132 = vset.pattern.permute.xlu0 0
    %2133 = vperm.xlu0 %2132, %v2119
    %v2134 = vpop.permute.xlu0 %2133
    %2137 = vset.pattern.permute.xlu0 0
    %2138 = vperm.xlu0 %2137, %v2120
    %v2139 = vpop.permute.xlu0 %2138
    %2142 = vset.pattern.permute.xlu0 0
    %2143 = vperm.xlu0 %2142, %v2121
    %v2144 = vpop.permute.xlu0 %2143
    %2147 = vset.pattern.permute.xlu0 0
    %2148 = vperm.xlu0 %2147, %v2122
    %v2149 = vpop.permute.xlu0 %2148
    %2152 = vset.pattern.permute.xlu0 0
    %2153 = vperm.xlu0 %2152, %v2123
    %v2154 = vpop.permute.xlu0 %2153
    %2157 = vset.pattern.permute.xlu0 0
    %2158 = vperm.xlu0 %2157, %v2124
    %v2159 = vpop.permute.xlu0 %2158
    %2162 = vset.pattern.permute.xlu0 0
    %2163 = vperm.xlu0 %2162, %v2125
    %v2164 = vpop.permute.xlu0 %2163
    %v2166 = vadd.f32 %v2006, %v2129
    %v2167 = vadd.f32 %v2007, %v2129
    %v2168 = vadd.f32 %v2008, %v2129
    %v2169 = vadd.f32 %v2009, %v2129
    %v2170 = vadd.f32 %v2010, %v2129
    %v2171 = vadd.f32 %v2011, %v2129
    %v2172 = vadd.f32 %v2012, %v2129
    %v2173 = vadd.f32 %v2013, %v2129
    %v2174 = vadd.f32 %v2014, %v2129
    %v2175 = vadd.f32 %v2015, %v2129
    %v2176 = vadd.f32 %v2016, %v2129
    %v2177 = vadd.f32 %v2017, %v2129
    %v2178 = vadd.f32 %v2018, %v2129
    %v2179 = vadd.f32 %v2019, %v2129
    %v2180 = vadd.f32 %v2020, %v2134
    %v2181 = vadd.f32 %v2021, %v2134
    %v2182 = vadd.f32 %v2022, %v2134
    %v2183 = vadd.f32 %v2023, %v2134
    %v2184 = vadd.f32 %v2024, %v2134
    %v2185 = vadd.f32 %v2025, %v2134
    %v2186 = vadd.f32 %v2026, %v2134
    %v2187 = vadd.f32 %v2027, %v2134
    %v2188 = vadd.f32 %v2028, %v2134
    %v2189 = vadd.f32 %v2029, %v2134
    %v2190 = vadd.f32 %v2030, %v2134
    %v2191 = vadd.f32 %v2031, %v2134
    %v2192 = vadd.f32 %v2032, %v2134
    %v2193 = vadd.f32 %v2033, %v2134
    %v2194 = vadd.f32 %v2034, %v2139
    %v2195 = vadd.f32 %v2035, %v2139
    %v2196 = vadd.f32 %v2036, %v2139
    %v2197 = vadd.f32 %v2037, %v2139
    %v2198 = vadd.f32 %v2038, %v2139
    %v2199 = vadd.f32 %v2039, %v2139
    %v2200 = vadd.f32 %v2040, %v2139
    %v2201 = vadd.f32 %v2041, %v2139
    %v2202 = vadd.f32 %v2042, %v2139
    %v2203 = vadd.f32 %v2043, %v2139
    %v2204 = vadd.f32 %v2044, %v2139
    %v2205 = vadd.f32 %v2045, %v2139
    %v2206 = vadd.f32 %v2046, %v2139
    %v2207 = vadd.f32 %v2047, %v2139
    %v2208 = vadd.f32 %v2048, %v2144
    %v2209 = vadd.f32 %v2049, %v2144
    %v2210 = vadd.f32 %v2050, %v2144
    %v2211 = vadd.f32 %v2051, %v2144
    %v2212 = vadd.f32 %v2052, %v2144
    %v2213 = vadd.f32 %v2053, %v2144
    %v2214 = vadd.f32 %v2054, %v2144
    %v2215 = vadd.f32 %v2055, %v2144
    %v2216 = vadd.f32 %v2056, %v2144
    %v2217 = vadd.f32 %v2057, %v2144
    %v2218 = vadd.f32 %v2058, %v2144
    %v2219 = vadd.f32 %v2059, %v2144
    %v2220 = vadd.f32 %v2060, %v2144
    %v2221 = vadd.f32 %v2061, %v2144
    %v2222 = vadd.f32 %v2062, %v2149
    %v2223 = vadd.f32 %v2063, %v2149
    %v2224 = vadd.f32 %v2064, %v2149
    %v2225 = vadd.f32 %v2065, %v2149
    %v2226 = vadd.f32 %v2066, %v2149
    %v2227 = vadd.f32 %v2067, %v2149
    %v2228 = vadd.f32 %v2068, %v2149
    %v2229 = vadd.f32 %v2069, %v2149
    %v2230 = vadd.f32 %v2070, %v2149
    %v2231 = vadd.f32 %v2071, %v2149
    %v2232 = vadd.f32 %v2072, %v2149
    %v2233 = vadd.f32 %v2073, %v2149
    %v2234 = vadd.f32 %v2074, %v2149
    %v2235 = vadd.f32 %v2075, %v2149
    %v2236 = vadd.f32 %v2076, %v2154
    %v2237 = vadd.f32 %v2077, %v2154
    %v2238 = vadd.f32 %v2078, %v2154
    %v2239 = vadd.f32 %v2079, %v2154
    %v2240 = vadd.f32 %v2080, %v2154
    %v2241 = vadd.f32 %v2081, %v2154
    %v2242 = vadd.f32 %v2082, %v2154
    %v2243 = vadd.f32 %v2083, %v2154
    %v2244 = vadd.f32 %v2084, %v2154
    %v2245 = vadd.f32 %v2085, %v2154
    %v2246 = vadd.f32 %v2086, %v2154
    %v2247 = vadd.f32 %v2087, %v2154
    %v2248 = vadd.f32 %v2088, %v2154
    %v2249 = vadd.f32 %v2089, %v2154
    %v2250 = vadd.f32 %v2090, %v2159
    %v2251 = vadd.f32 %v2091, %v2159
    %v2252 = vadd.f32 %v2092, %v2159
    %v2253 = vadd.f32 %v2093, %v2159
    %v2254 = vadd.f32 %v2094, %v2159
    %v2255 = vadd.f32 %v2095, %v2159
    %v2256 = vadd.f32 %v2096, %v2159
    %v2257 = vadd.f32 %v2097, %v2159
    %v2258 = vadd.f32 %v2098, %v2159
    %v2259 = vadd.f32 %v2099, %v2159
    %v2260 = vadd.f32 %v2100, %v2159
    %v2261 = vadd.f32 %v2101, %v2159
    %v2262 = vadd.f32 %v2102, %v2159
    %v2263 = vadd.f32 %v2103, %v2159
    %v2264 = vadd.f32 %v2104, %v2164
    %v2265 = vadd.f32 %v2105, %v2164
    %v2266 = vadd.f32 %v2106, %v2164
    %v2267 = vadd.f32 %v2107, %v2164
    %v2268 = vadd.f32 %v2108, %v2164
    %v2269 = vadd.f32 %v2109, %v2164
    %v2270 = vadd.f32 %v2110, %v2164
    %v2271 = vadd.f32 %v2111, %v2164
    %v2272 = vadd.f32 %v2112, %v2164
    %v2273 = vadd.f32 %v2113, %v2164
    %v2274 = vadd.f32 %v2114, %v2164
    %v2275 = vadd.f32 %v2115, %v2164
    %v2276 = vadd.f32 %v2116, %v2164
    %v2277 = vadd.f32 %v2117, %v2164
    %v2278 = vmax.f32 %v2222, %v2236
    %v2279 = vmax.f32 %v2278, %v2250
    %v2280 = vmax.f32 %v2279, %v2264
    %v2281 = vrot.slane %v2280, 4
    %v2282 = vmax.f32 %v2280, %v2281
    %v2283 = vrot.slane %v2282, 2
    %v2284 = vmax.f32 %v2282, %v2283
    %v2285 = vrot.slane %v2284, 1
    %v2286 = vmax.f32 %v2284, %v2285
    %v2287 = vmax.f32 %v2223, %v2237
    %v2288 = vmax.f32 %v2287, %v2251
    %v2289 = vmax.f32 %v2288, %v2265
    %v2290 = vrot.slane %v2289, 4
    %v2291 = vmax.f32 %v2289, %v2290
    %v2292 = vrot.slane %v2291, 2
    %v2293 = vmax.f32 %v2291, %v2292
    %v2294 = vrot.slane %v2293, 1
    %v2295 = vmax.f32 %v2293, %v2294
    %v2296 = vmax.f32 %v2224, %v2238
    %v2297 = vmax.f32 %v2296, %v2252
    %v2298 = vmax.f32 %v2297, %v2266
    %v2299 = vrot.slane %v2298, 4
    %v2300 = vmax.f32 %v2298, %v2299
    %v2301 = vrot.slane %v2300, 2
    %v2302 = vmax.f32 %v2300, %v2301
    %v2303 = vrot.slane %v2302, 1
    %v2304 = vmax.f32 %v2302, %v2303
    %v2305 = vmax.f32 %v2225, %v2239
    %v2306 = vmax.f32 %v2305, %v2253
    %v2307 = vmax.f32 %v2306, %v2267
    %v2308 = vrot.slane %v2307, 4
    %v2309 = vmax.f32 %v2307, %v2308
    %v2310 = vrot.slane %v2309, 2
    %v2311 = vmax.f32 %v2309, %v2310
    %v2312 = vrot.slane %v2311, 1
    %v2313 = vmax.f32 %v2311, %v2312
    %v2314 = vmax.f32 %v2226, %v2240
    %v2315 = vmax.f32 %v2314, %v2254
    %v2316 = vmax.f32 %v2315, %v2268
    %v2317 = vrot.slane %v2316, 4
    %v2318 = vmax.f32 %v2316, %v2317
    %v2319 = vrot.slane %v2318, 2
    %v2320 = vmax.f32 %v2318, %v2319
    %v2321 = vrot.slane %v2320, 1
    %v2322 = vmax.f32 %v2320, %v2321
    %v2323 = vmax.f32 %v2227, %v2241
    %v2324 = vmax.f32 %v2323, %v2255
    %v2325 = vmax.f32 %v2324, %v2269
    %v2326 = vrot.slane %v2325, 4
    %v2327 = vmax.f32 %v2325, %v2326
    %v2328 = vrot.slane %v2327, 2
    %v2329 = vmax.f32 %v2327, %v2328
    %v2330 = vrot.slane %v2329, 1
    %v2331 = vmax.f32 %v2329, %v2330
    %v2332 = vmax.f32 %v2228, %v2242
    %v2333 = vmax.f32 %v2332, %v2256
    %v2334 = vmax.f32 %v2333, %v2270
    %v2335 = vrot.slane %v2334, 4
    %v2336 = vmax.f32 %v2334, %v2335
    %v2337 = vrot.slane %v2336, 2
    %v2338 = vmax.f32 %v2336, %v2337
    %v2339 = vrot.slane %v2338, 1
    %v2340 = vmax.f32 %v2338, %v2339
    %v2341 = vmax.f32 %v2229, %v2243
    %v2342 = vmax.f32 %v2341, %v2257
    %v2343 = vmax.f32 %v2342, %v2271
    %v2344 = vrot.slane %v2343, 4
    %v2345 = vmax.f32 %v2343, %v2344
    %v2346 = vrot.slane %v2345, 2
    %v2347 = vmax.f32 %v2345, %v2346
    %v2348 = vrot.slane %v2347, 1
    %v2349 = vmax.f32 %v2347, %v2348
    %v2350 = vmax.f32 %v2230, %v2244
    %v2351 = vmax.f32 %v2350, %v2258
    %v2352 = vmax.f32 %v2351, %v2272
    %v2353 = vrot.slane %v2352, 4
    %v2354 = vmax.f32 %v2352, %v2353
    %v2355 = vrot.slane %v2354, 2
    %v2356 = vmax.f32 %v2354, %v2355
    %v2357 = vrot.slane %v2356, 1
    %v2358 = vmax.f32 %v2356, %v2357
    %v2359 = vmax.f32 %v2231, %v2245
    %v2360 = vmax.f32 %v2359, %v2259
    %v2361 = vmax.f32 %v2360, %v2273
    %v2362 = vrot.slane %v2361, 4
    %v2363 = vmax.f32 %v2361, %v2362
    %v2364 = vrot.slane %v2363, 2
    %v2365 = vmax.f32 %v2363, %v2364
    %v2366 = vrot.slane %v2365, 1
    %v2367 = vmax.f32 %v2365, %v2366
    %v2368 = vmax.f32 %v2232, %v2246
    %v2369 = vmax.f32 %v2368, %v2260
    %v2370 = vmax.f32 %v2369, %v2274
    %v2371 = vrot.slane %v2370, 4
    %v2372 = vmax.f32 %v2370, %v2371
    %v2373 = vrot.slane %v2372, 2
    %v2374 = vmax.f32 %v2372, %v2373
    %v2375 = vrot.slane %v2374, 1
    %v2376 = vmax.f32 %v2374, %v2375
    %v2377 = vmax.f32 %v2233, %v2247
    %v2378 = vmax.f32 %v2377, %v2261
    %v2379 = vmax.f32 %v2378, %v2275
    %v2380 = vrot.slane %v2379, 4
    %v2381 = vmax.f32 %v2379, %v2380
    %v2382 = vrot.slane %v2381, 2
    %v2383 = vmax.f32 %v2381, %v2382
    %v2384 = vrot.slane %v2383, 1
    %v2385 = vmax.f32 %v2383, %v2384
    %v2386 = vmax.f32 %v2234, %v2248
    %v2387 = vmax.f32 %v2386, %v2262
    %v2388 = vmax.f32 %v2387, %v2276
    %v2389 = vrot.slane %v2388, 4
    %v2390 = vmax.f32 %v2388, %v2389
    %v2391 = vrot.slane %v2390, 2
    %v2392 = vmax.f32 %v2390, %v2391
    %v2393 = vrot.slane %v2392, 1
    %v2394 = vmax.f32 %v2392, %v2393
    %v2395 = vmax.f32 %v2235, %v2249
    %v2396 = vmax.f32 %v2395, %v2263
    %v2397 = vmax.f32 %v2396, %v2277
    %v2398 = vrot.slane %v2397, 4
    %v2399 = vmax.f32 %v2397, %v2398
    %v2400 = vrot.slane %v2399, 2
    %v2401 = vmax.f32 %v2399, %v2400
    %v2402 = vrot.slane %v2401, 1
    %v2403 = vmax.f32 %v2401, %v2402
    %v2404 = vsub.f32 %v2222, %v2286
    %v2405 = vsub.f32 %v2223, %v2295
    %v2406 = vsub.f32 %v2224, %v2304
    %v2407 = vsub.f32 %v2225, %v2313
    %v2408 = vsub.f32 %v2226, %v2322
    %v2409 = vsub.f32 %v2227, %v2331
    %v2410 = vsub.f32 %v2228, %v2340
    %v2411 = vsub.f32 %v2229, %v2349
    %v2412 = vsub.f32 %v2230, %v2358
    %v2413 = vsub.f32 %v2231, %v2367
    %v2414 = vsub.f32 %v2232, %v2376
    %v2415 = vsub.f32 %v2233, %v2385
    %v2416 = vsub.f32 %v2234, %v2394
    %v2417 = vsub.f32 %v2235, %v2403
    %v2418 = vsub.f32 %v2236, %v2286
    %v2419 = vsub.f32 %v2237, %v2295
    %v2420 = vsub.f32 %v2238, %v2304
    %v2421 = vsub.f32 %v2239, %v2313
    %v2422 = vsub.f32 %v2240, %v2322
    %v2423 = vsub.f32 %v2241, %v2331
    %v2424 = vsub.f32 %v2242, %v2340
    %v2425 = vsub.f32 %v2243, %v2349
    %v2426 = vsub.f32 %v2244, %v2358
    %v2427 = vsub.f32 %v2245, %v2367
    %v2428 = vsub.f32 %v2246, %v2376
    %v2429 = vsub.f32 %v2247, %v2385
    %v2430 = vsub.f32 %v2248, %v2394
    %v2431 = vsub.f32 %v2249, %v2403
    %v2432 = vsub.f32 %v2250, %v2286
    %v2433 = vsub.f32 %v2251, %v2295
    %v2434 = vsub.f32 %v2252, %v2304
    %v2435 = vsub.f32 %v2253, %v2313
    %v2436 = vsub.f32 %v2254, %v2322
    %v2437 = vsub.f32 %v2255, %v2331
    %v2438 = vsub.f32 %v2256, %v2340
    %v2439 = vsub.f32 %v2257, %v2349
    %v2440 = vsub.f32 %v2258, %v2358
    %v2441 = vsub.f32 %v2259, %v2367
    %v2442 = vsub.f32 %v2260, %v2376
    %v2443 = vsub.f32 %v2261, %v2385
    %v2444 = vsub.f32 %v2262, %v2394
    %v2445 = vsub.f32 %v2263, %v2403
    %v2446 = vsub.f32 %v2264, %v2286
    %v2447 = vsub.f32 %v2265, %v2295
    %v2448 = vsub.f32 %v2266, %v2304
    %v2449 = vsub.f32 %v2267, %v2313
    %v2450 = vsub.f32 %v2268, %v2322
    %v2451 = vsub.f32 %v2269, %v2331
    %v2452 = vsub.f32 %v2270, %v2340
    %v2453 = vsub.f32 %v2271, %v2349
    %v2454 = vsub.f32 %v2272, %v2358
    %v2455 = vsub.f32 %v2273, %v2367
    %v2456 = vsub.f32 %v2274, %v2376
    %v2457 = vsub.f32 %v2275, %v2385
    %v2458 = vsub.f32 %v2276, %v2394
    %v2459 = vsub.f32 %v2277, %v2403
    %v2460 = vmul.f32 %v2404, 1.442695
    %v2461 = vpow.pop %v2460
    %v2462 = vmul.f32 %v2405, 1.442695
    %v2463 = vpow.pop %v2462
    %v2464 = vmul.f32 %v2406, 1.442695
    %v2465 = vpow.pop %v2464
    %v2466 = vmul.f32 %v2407, 1.442695
    %v2467 = vpow.pop %v2466
    %v2468 = vmul.f32 %v2408, 1.442695
    %v2469 = vpow.pop %v2468
    %v2470 = vmul.f32 %v2409, 1.442695
    %v2471 = vpow.pop %v2470
    %v2472 = vmul.f32 %v2410, 1.442695
    %v2473 = vpow.pop %v2472
    %v2474 = vmul.f32 %v2411, 1.442695
    %v2475 = vpow.pop %v2474
    %v2476 = vmul.f32 %v2412, 1.442695
    %v2477 = vpow.pop %v2476
    %v2478 = vmul.f32 %v2413, 1.442695
    %v2479 = vpow.pop %v2478
    %v2480 = vmul.f32 %v2414, 1.442695
    %v2481 = vpow.pop %v2480
    %v2482 = vmul.f32 %v2415, 1.442695
    %v2483 = vpow.pop %v2482
    %v2484 = vmul.f32 %v2416, 1.442695
    %v2485 = vpow.pop %v2484
    %v2486 = vmul.f32 %v2417, 1.442695
    %v2487 = vpow.pop %v2486
    %v2488 = vmul.f32 %v2418, 1.442695
    %v2489 = vpow.pop %v2488
    %v2490 = vmul.f32 %v2419, 1.442695
    %v2491 = vpow.pop %v2490
    %v2492 = vmul.f32 %v2420, 1.442695
    %v2493 = vpow.pop %v2492
    %v2494 = vmul.f32 %v2421, 1.442695
    %v2495 = vpow.pop %v2494
    %v2496 = vmul.f32 %v2422, 1.442695
    %v2497 = vpow.pop %v2496
    %v2498 = vmul.f32 %v2423, 1.442695
    %v2499 = vpow.pop %v2498
    %v2500 = vmul.f32 %v2424, 1.442695
    %v2501 = vpow.pop %v2500
    %v2502 = vmul.f32 %v2425, 1.442695
    %v2503 = vpow.pop %v2502
    %v2504 = vmul.f32 %v2426, 1.442695
    %v2505 = vpow.pop %v2504
    %v2506 = vmul.f32 %v2427, 1.442695
    %v2507 = vpow.pop %v2506
    %v2508 = vmul.f32 %v2428, 1.442695
    %v2509 = vpow.pop %v2508
    %v2510 = vmul.f32 %v2429, 1.442695
    %v2511 = vpow.pop %v2510
    %v2512 = vmul.f32 %v2430, 1.442695
    %v2513 = vpow.pop %v2512
    %v2514 = vmul.f32 %v2431, 1.442695
    %v2515 = vpow.pop %v2514
    %v2516 = vmul.f32 %v2432, 1.442695
    %v2517 = vpow.pop %v2516
    %v2518 = vmul.f32 %v2433, 1.442695
    %v2519 = vpow.pop %v2518
    %v2520 = vmul.f32 %v2434, 1.442695
    %v2521 = vpow.pop %v2520
    %v2522 = vmul.f32 %v2435, 1.442695
    %v2523 = vpow.pop %v2522
    %v2524 = vmul.f32 %v2436, 1.442695
    %v2525 = vpow.pop %v2524
    %v2526 = vmul.f32 %v2437, 1.442695
    %v2527 = vpow.pop %v2526
    %v2528 = vmul.f32 %v2438, 1.442695
    %v2529 = vpow.pop %v2528
    %v2530 = vmul.f32 %v2439, 1.442695
    %v2531 = vpow.pop %v2530
    %v2532 = vmul.f32 %v2440, 1.442695
    %v2533 = vpow.pop %v2532
    %v2534 = vmul.f32 %v2441, 1.442695
    %v2535 = vpow.pop %v2534
    %v2536 = vmul.f32 %v2442, 1.442695
    %v2537 = vpow.pop %v2536
    %v2538 = vmul.f32 %v2443, 1.442695
    %v2539 = vpow.pop %v2538
    %v2540 = vmul.f32 %v2444, 1.442695
    %v2541 = vpow.pop %v2540
    %v2542 = vmul.f32 %v2445, 1.442695
    %v2543 = vpow.pop %v2542
    %v2544 = vmul.f32 %v2446, 1.442695
    %v2545 = vpow.pop %v2544
    %v2546 = vmul.f32 %v2447, 1.442695
    %v2547 = vpow.pop %v2546
    %v2548 = vmul.f32 %v2448, 1.442695
    %v2549 = vpow.pop %v2548
    %v2550 = vmul.f32 %v2449, 1.442695
    %v2551 = vpow.pop %v2550
    %v2552 = vmul.f32 %v2450, 1.442695
    %v2553 = vpow.pop %v2552
    %v2554 = vmul.f32 %v2451, 1.442695
    %v2555 = vpow.pop %v2554
    %v2556 = vmul.f32 %v2452, 1.442695
    %v2557 = vpow.pop %v2556
    %v2558 = vmul.f32 %v2453, 1.442695
    %v2559 = vpow.pop %v2558
    %v2560 = vmul.f32 %v2454, 1.442695
    %v2561 = vpow.pop %v2560
    %v2562 = vmul.f32 %v2455, 1.442695
    %v2563 = vpow.pop %v2562
    %v2564 = vmul.f32 %v2456, 1.442695
    %v2565 = vpow.pop %v2564
    %v2566 = vmul.f32 %v2457, 1.442695
    %v2567 = vpow.pop %v2566
    %v2568 = vmul.f32 %v2458, 1.442695
    %v2569 = vpow.pop %v2568
    %v2570 = vmul.f32 %v2459, 1.442695
    %v2571 = vpow.pop %v2570
    %v2572 = vadd.f32 %v2461, %v2489
    %v2573 = vadd.f32 %v2572, %v2517
    %v2574 = vadd.f32 %v2573, %v2545
    %v2575 = vrot.slane %v2574, 4
    %v2576 = vadd.f32 %v2574, %v2575
    %v2577 = vrot.slane %v2576, 2
    %v2578 = vadd.f32 %v2576, %v2577
    %v2579 = vrot.slane %v2578, 1
    %v2580 = vadd.f32 %v2578, %v2579
    %v2581 = vadd.f32 %v2463, %v2491
    %v2582 = vadd.f32 %v2581, %v2519
    %v2583 = vadd.f32 %v2582, %v2547
    %v2584 = vrot.slane %v2583, 4
    %v2585 = vadd.f32 %v2583, %v2584
    %v2586 = vrot.slane %v2585, 2
    %v2587 = vadd.f32 %v2585, %v2586
    %v2588 = vrot.slane %v2587, 1
    %v2589 = vadd.f32 %v2587, %v2588
    %v2590 = vadd.f32 %v2465, %v2493
    %v2591 = vadd.f32 %v2590, %v2521
    %v2592 = vadd.f32 %v2591, %v2549
    %v2593 = vrot.slane %v2592, 4
    %v2594 = vadd.f32 %v2592, %v2593
    %v2595 = vrot.slane %v2594, 2
    %v2596 = vadd.f32 %v2594, %v2595
    %v2597 = vrot.slane %v2596, 1
    %v2598 = vadd.f32 %v2596, %v2597
    %v2599 = vadd.f32 %v2467, %v2495
    %v2600 = vadd.f32 %v2599, %v2523
    %v2601 = vadd.f32 %v2600, %v2551
    %v2602 = vrot.slane %v2601, 4
    %v2603 = vadd.f32 %v2601, %v2602
    %v2604 = vrot.slane %v2603, 2
    %v2605 = vadd.f32 %v2603, %v2604
    %v2606 = vrot.slane %v2605, 1
    %v2607 = vadd.f32 %v2605, %v2606
    %v2608 = vadd.f32 %v2469, %v2497
    %v2609 = vadd.f32 %v2608, %v2525
    %v2610 = vadd.f32 %v2609, %v2553
    %v2611 = vrot.slane %v2610, 4
    %v2612 = vadd.f32 %v2610, %v2611
    %v2613 = vrot.slane %v2612, 2
    %v2614 = vadd.f32 %v2612, %v2613
    %v2615 = vrot.slane %v2614, 1
    %v2616 = vadd.f32 %v2614, %v2615
    %v2617 = vadd.f32 %v2471, %v2499
    %v2618 = vadd.f32 %v2617, %v2527
    %v2619 = vadd.f32 %v2618, %v2555
    %v2620 = vrot.slane %v2619, 4
    %v2621 = vadd.f32 %v2619, %v2620
    %v2622 = vrot.slane %v2621, 2
    %v2623 = vadd.f32 %v2621, %v2622
    %v2624 = vrot.slane %v2623, 1
    %v2625 = vadd.f32 %v2623, %v2624
    %v2626 = vadd.f32 %v2473, %v2501
    %v2627 = vadd.f32 %v2626, %v2529
    %v2628 = vadd.f32 %v2627, %v2557
    %v2629 = vrot.slane %v2628, 4
    %v2630 = vadd.f32 %v2628, %v2629
    %v2631 = vrot.slane %v2630, 2
    %v2632 = vadd.f32 %v2630, %v2631
    %v2633 = vrot.slane %v2632, 1
    %v2634 = vadd.f32 %v2632, %v2633
    %v2635 = vadd.f32 %v2475, %v2503
    %v2636 = vadd.f32 %v2635, %v2531
    %v2637 = vadd.f32 %v2636, %v2559
    %v2638 = vrot.slane %v2637, 4
    %v2639 = vadd.f32 %v2637, %v2638
    %v2640 = vrot.slane %v2639, 2
    %v2641 = vadd.f32 %v2639, %v2640
    %v2642 = vrot.slane %v2641, 1
    %v2643 = vadd.f32 %v2641, %v2642
    %v2644 = vadd.f32 %v2477, %v2505
    %v2645 = vadd.f32 %v2644, %v2533
    %v2646 = vadd.f32 %v2645, %v2561
    %v2647 = vrot.slane %v2646, 4
    %v2648 = vadd.f32 %v2646, %v2647
    %v2649 = vrot.slane %v2648, 2
    %v2650 = vadd.f32 %v2648, %v2649
    %v2651 = vrot.slane %v2650, 1
    %v2652 = vadd.f32 %v2650, %v2651
    %v2653 = vadd.f32 %v2479, %v2507
    %v2654 = vadd.f32 %v2653, %v2535
    %v2655 = vadd.f32 %v2654, %v2563
    %v2656 = vrot.slane %v2655, 4
    %v2657 = vadd.f32 %v2655, %v2656
    %v2658 = vrot.slane %v2657, 2
    %v2659 = vadd.f32 %v2657, %v2658
    %v2660 = vrot.slane %v2659, 1
    %v2661 = vadd.f32 %v2659, %v2660
    %v2662 = vadd.f32 %v2481, %v2509
    %v2663 = vadd.f32 %v2662, %v2537
    %v2664 = vadd.f32 %v2663, %v2565
    %v2665 = vrot.slane %v2664, 4
    %v2666 = vadd.f32 %v2664, %v2665
    %v2667 = vrot.slane %v2666, 2
    %v2668 = vadd.f32 %v2666, %v2667
    %v2669 = vrot.slane %v2668, 1
    %v2670 = vadd.f32 %v2668, %v2669
    %v2671 = vadd.f32 %v2483, %v2511
    %v2672 = vadd.f32 %v2671, %v2539
    %v2673 = vadd.f32 %v2672, %v2567
    %v2674 = vrot.slane %v2673, 4
    %v2675 = vadd.f32 %v2673, %v2674
    %v2676 = vrot.slane %v2675, 2
    %v2677 = vadd.f32 %v2675, %v2676
    %v2678 = vrot.slane %v2677, 1
    %v2679 = vadd.f32 %v2677, %v2678
    %v2680 = vadd.f32 %v2485, %v2513
    %v2681 = vadd.f32 %v2680, %v2541
    %v2682 = vadd.f32 %v2681, %v2569
    %v2683 = vrot.slane %v2682, 4
    %v2684 = vadd.f32 %v2682, %v2683
    %v2685 = vrot.slane %v2684, 2
    %v2686 = vadd.f32 %v2684, %v2685
    %v2687 = vrot.slane %v2686, 1
    %v2688 = vadd.f32 %v2686, %v2687
    %v2689 = vadd.f32 %v2487, %v2515
    %v2690 = vadd.f32 %v2689, %v2543
    %v2691 = vadd.f32 %v2690, %v2571
    %v2692 = vrot.slane %v2691, 4
    %v2693 = vadd.f32 %v2691, %v2692
    %v2694 = vrot.slane %v2693, 2
    %v2695 = vadd.f32 %v2693, %v2694
    %v2696 = vrot.slane %v2695, 1
    %v2697 = vadd.f32 %v2695, %v2696
    %v2698 = vrcp.pop %v2580
    %v2699 = vrcp.pop %v2589
    %v2700 = vrcp.pop %v2598
    %v2701 = vrcp.pop %v2607
    %v2702 = vrcp.pop %v2616
    %v2703 = vrcp.pop %v2625
    %v2704 = vrcp.pop %v2634
    %v2705 = vrcp.pop %v2643
    %v2706 = vrcp.pop %v2652
    %v2707 = vrcp.pop %v2661
    %v2708 = vrcp.pop %v2670
    %v2709 = vrcp.pop %v2679
    %v2710 = vrcp.pop %v2688
    %v2711 = vrcp.pop %v2697
    %v2712 = vmul.f32 %v2461, %v2698
    %v2713 = vmul.f32 %v2463, %v2699
    %v2714 = vmul.f32 %v2465, %v2700
    %v2715 = vmul.f32 %v2467, %v2701
    %v2716 = vmul.f32 %v2469, %v2702
    %v2717 = vmul.f32 %v2471, %v2703
    %v2718 = vmul.f32 %v2473, %v2704
    %v2719 = vmul.f32 %v2475, %v2705
    %v2720 = vmul.f32 %v2477, %v2706
    %v2721 = vmul.f32 %v2479, %v2707
    %v2722 = vmul.f32 %v2481, %v2708
    %v2723 = vmul.f32 %v2483, %v2709
    %v2724 = vmul.f32 %v2485, %v2710
    %v2725 = vmul.f32 %v2487, %v2711
    %v2726 = vmul.f32 %v2489, %v2698
    %v2727 = vmul.f32 %v2491, %v2699
    %v2728 = vmul.f32 %v2493, %v2700
    %v2729 = vmul.f32 %v2495, %v2701
    %v2730 = vmul.f32 %v2497, %v2702
    %v2731 = vmul.f32 %v2499, %v2703
    %v2732 = vmul.f32 %v2501, %v2704
    %v2733 = vmul.f32 %v2503, %v2705
    %v2734 = vmul.f32 %v2505, %v2706
    %v2735 = vmul.f32 %v2507, %v2707
    %v2736 = vmul.f32 %v2509, %v2708
    %v2737 = vmul.f32 %v2511, %v2709
    %v2738 = vmul.f32 %v2513, %v2710
    %v2739 = vmul.f32 %v2515, %v2711
    %v2740 = vmul.f32 %v2517, %v2698
    %v2741 = vmul.f32 %v2519, %v2699
    %v2742 = vmul.f32 %v2521, %v2700
    %v2743 = vmul.f32 %v2523, %v2701
    %v2744 = vmul.f32 %v2525, %v2702
    %v2745 = vmul.f32 %v2527, %v2703
    %v2746 = vmul.f32 %v2529, %v2704
    %v2747 = vmul.f32 %v2531, %v2705
    %v2748 = vmul.f32 %v2533, %v2706
    %v2749 = vmul.f32 %v2535, %v2707
    %v2750 = vmul.f32 %v2537, %v2708
    %v2751 = vmul.f32 %v2539, %v2709
    %v2752 = vmul.f32 %v2541, %v2710
    %v2753 = vmul.f32 %v2543, %v2711
    %v2754 = vmul.f32 %v2545, %v2698
    %v2755 = vmul.f32 %v2547, %v2699
    %v2756 = vmul.f32 %v2549, %v2700
    %v2757 = vmul.f32 %v2551, %v2701
    %v2758 = vmul.f32 %v2553, %v2702
    %v2759 = vmul.f32 %v2555, %v2703
    %v2760 = vmul.f32 %v2557, %v2704
    %v2761 = vmul.f32 %v2559, %v2705
    %v2762 = vmul.f32 %v2561, %v2706
    %v2763 = vmul.f32 %v2563, %v2707
    %v2764 = vmul.f32 %v2565, %v2708
    %v2765 = vmul.f32 %v2567, %v2709
    %v2766 = vmul.f32 %v2569, %v2710
    %v2767 = vmul.f32 %v2571, %v2711
    %v2768 = vmul.f32 %v2712, %v2166
    %v2769 = vmul.f32 %v2713, %v2167
    %v2770 = vmul.f32 %v2714, %v2168
    %v2771 = vmul.f32 %v2715, %v2169
    %v2772 = vmul.f32 %v2716, %v2170
    %v2773 = vmul.f32 %v2717, %v2171
    %v2774 = vmul.f32 %v2718, %v2172
    %v2775 = vmul.f32 %v2719, %v2173
    %v2776 = vmul.f32 %v2720, %v2174
    %v2777 = vmul.f32 %v2721, %v2175
    %v2778 = vmul.f32 %v2722, %v2176
    %v2779 = vmul.f32 %v2723, %v2177
    %v2780 = vmul.f32 %v2724, %v2178
    %v2781 = vmul.f32 %v2725, %v2179
    %v2782 = vmul.f32 %v2726, %v2180
    %v2783 = vmul.f32 %v2727, %v2181
    %v2784 = vmul.f32 %v2728, %v2182
    %v2785 = vmul.f32 %v2729, %v2183
    %v2786 = vmul.f32 %v2730, %v2184
    %v2787 = vmul.f32 %v2731, %v2185
    %v2788 = vmul.f32 %v2732, %v2186
    %v2789 = vmul.f32 %v2733, %v2187
    %v2790 = vmul.f32 %v2734, %v2188
    %v2791 = vmul.f32 %v2735, %v2189
    %v2792 = vmul.f32 %v2736, %v2190
    %v2793 = vmul.f32 %v2737, %v2191
    %v2794 = vmul.f32 %v2738, %v2192
    %v2795 = vmul.f32 %v2739, %v2193
    %v2796 = vmul.f32 %v2740, %v2194
    %v2797 = vmul.f32 %v2741, %v2195
    %v2798 = vmul.f32 %v2742, %v2196
    %v2799 = vmul.f32 %v2743, %v2197
    %v2800 = vmul.f32 %v2744, %v2198
    %v2801 = vmul.f32 %v2745, %v2199
    %v2802 = vmul.f32 %v2746, %v2200
    %v2803 = vmul.f32 %v2747, %v2201
    %v2804 = vmul.f32 %v2748, %v2202
    %v2805 = vmul.f32 %v2749, %v2203
    %v2806 = vmul.f32 %v2750, %v2204
    %v2807 = vmul.f32 %v2751, %v2205
    %v2808 = vmul.f32 %v2752, %v2206
    %v2809 = vmul.f32 %v2753, %v2207
    %v2810 = vmul.f32 %v2754, %v2208
    %v2811 = vmul.f32 %v2755, %v2209
    %v2812 = vmul.f32 %v2756, %v2210
    %v2813 = vmul.f32 %v2757, %v2211
    %v2814 = vmul.f32 %v2758, %v2212
    %v2815 = vmul.f32 %v2759, %v2213
    %v2816 = vmul.f32 %v2760, %v2214
    %v2817 = vmul.f32 %v2761, %v2215
    %v2818 = vmul.f32 %v2762, %v2216
    %v2819 = vmul.f32 %v2763, %v2217
    %v2820 = vmul.f32 %v2764, %v2218
    %v2821 = vmul.f32 %v2765, %v2219
    %v2822 = vmul.f32 %v2766, %v2220
    %v2823 = vmul.f32 %v2767, %v2221
    %v2824 = vadd.f32 %v2768, %v2769
    %v2825 = vadd.f32 %v2782, %v2783
    %v2826 = vadd.f32 %v2796, %v2797
    %v2827 = vadd.f32 %v2810, %v2811
    %v2828 = vadd.f32 %v2824, %v2770
    %v2829 = vadd.f32 %v2825, %v2784
    %v2830 = vadd.f32 %v2826, %v2798
    %v2831 = vadd.f32 %v2827, %v2812
    %v2832 = vadd.f32 %v2828, %v2771
    %v2833 = vadd.f32 %v2829, %v2785
    %v2834 = vadd.f32 %v2830, %v2799
    %v2835 = vadd.f32 %v2831, %v2813
    %v2836 = vadd.f32 %v2832, %v2772
    %v2837 = vadd.f32 %v2833, %v2786
    %v2838 = vadd.f32 %v2834, %v2800
    %v2839 = vadd.f32 %v2835, %v2814
    %v2840 = vadd.f32 %v2836, %v2773
    %v2841 = vadd.f32 %v2837, %v2787
    %v2842 = vadd.f32 %v2838, %v2801
    %v2843 = vadd.f32 %v2839, %v2815
    %v2844 = vadd.f32 %v2840, %v2774
    %v2845 = vadd.f32 %v2841, %v2788
    %v2846 = vadd.f32 %v2842, %v2802
    %v2847 = vadd.f32 %v2843, %v2816
    %v2848 = vadd.f32 %v2844, %v2775
    %v2849 = vadd.f32 %v2845, %v2789
    %v2850 = vadd.f32 %v2846, %v2803
    %v2851 = vadd.f32 %v2847, %v2817
    %v2852 = vadd.f32 %v2848, %v2776
    %v2853 = vadd.f32 %v2849, %v2790
    %v2854 = vadd.f32 %v2850, %v2804
    %v2855 = vadd.f32 %v2851, %v2818
    %v2856 = vadd.f32 %v2852, %v2777
    %v2857 = vadd.f32 %v2853, %v2791
    %v2858 = vadd.f32 %v2854, %v2805
    %v2859 = vadd.f32 %v2855, %v2819
    %v2860 = vadd.f32 %v2856, %v2778
    %v2861 = vadd.f32 %v2857, %v2792
    %v2862 = vadd.f32 %v2858, %v2806
    %v2863 = vadd.f32 %v2859, %v2820
    %v2864 = vadd.f32 %v2860, %v2779
    %v2865 = vadd.f32 %v2861, %v2793
    %v2866 = vadd.f32 %v2862, %v2807
    %v2867 = vadd.f32 %v2863, %v2821
    %v2868 = vadd.f32 %v2864, %v2780
    %v2869 = vadd.f32 %v2865, %v2794
    %v2870 = vadd.f32 %v2866, %v2808
    %v2871 = vadd.f32 %v2867, %v2822
    %v2872 = vadd.f32 %v2868, %v2781
    %v2873 = vadd.f32 %v2869, %v2795
    %v2874 = vadd.f32 %v2870, %v2809
    %v2875 = vadd.f32 %v2871, %v2823
    %v2876 = vld [vmem:[%s3] sm:$0xf]
    %v2877 = vpack.c.bf16 %v2873, %v2872
    %v2878 = vpack.c.bf16 %v2875, %v2874
    %v2879 = vld [vmem:[%s4] sm:$0xff]
    %2881 = vset.pattern.permute.xlu0 0
    %2882 = vperm.xlu0 %2881, %v2879
    %v2883 = vpop.permute.xlu0 %2882
    %vm2885 = vcmask 261120
    %v2887 = vsel %vm2885, %v2876, 0
    %2889 = vmatprep.subr.bf16.mxu0 0
    %2890 = vmatpush1.bf16.msra.mxu0 %v2877
    %2891 = vmatprep.subr.bf16.mxu0 0
    %2892 = vmatpush1.bf16.msra.mxu0 %v2878
    %2893 = vmatprep.subr.bf16.mxu0 0
    %2894 = vmatpush1.bf16.msra.mxu0 0
    %2895 = vmatprep.subr.bf16.mxu0 0
    %2896 = vmatpush1.bf16.msra.mxu0 0
    %2897 = vmatprep.subr.bf16.mxu0 0
    %2898 = vmatpush1.bf16.msra.mxu0 0
    %2899 = vmatprep.subr.bf16.mxu0 0
    %2900 = vmatpush1.bf16.msra.mxu0 0
    %2901 = vmatprep.subr.bf16.mxu0 0
    %2902 = vmatpush1.bf16.msra.mxu0 0
    %2903 = vmatprep.subr.bf16.mxu0 0
    %2904 = vmatpush1.bf16.msra.mxu0 0
    %2905 = vmatprep.subr.bf16.mxu0 0
    %2906 = vmatpush1.bf16.msra.mxu0 0
    %2907 = vmatprep.subr.bf16.mxu0 0
    %2908 = vmatpush1.bf16.msra.mxu0 0
    %2909 = vmatprep.subr.bf16.mxu0 0
    %2910 = vmatpush1.bf16.msra.mxu0 0
    %2911 = vmatprep.subr.bf16.mxu0 0
    %2912 = vmatpush1.bf16.msra.mxu0 0
    %2913 = vmatprep.subr.bf16.mxu0 0
    %2914 = vmatpush1.bf16.msra.mxu0 0
    %2915 = vmatprep.subr.bf16.mxu0 0
    %2916 = vmatpush1.bf16.msra.mxu0 0
    %2917 = vmatprep.subr.bf16.mxu0 0
    %2918 = vmatpush1.bf16.msra.mxu0 0
    %2919 = vmatprep.subr.bf16.mxu0 0
    %2920 = vmatpush1.bf16.msra.mxu0 0
    %2921 = vmatprep.mubr.bf16.mxu0 0
    %2922 = vmatmul.mubr.bf16.gmra.mrb[0].mxu0 %v2887
    %v2923 = vpop.f32.mrb[0].mxu0
    %v2924 = vadd.f32 %v2883, %v2923
    %v2925 = vpop.f32.mrb[0].mxu0
    %v2926 = vpop.f32.mrb[0].mxu0
    %v2927 = vpop.f32.mrb[0].mxu0
    %2928 = vdwg.mxu0
    %2929 = vst [vmem:[#allocation2] sm:$0xff] %v2924
    // Predicated region
    $region22: #{tpu_custom_call.1} parent=1 // pred_check
      _
    $region23: #{tpu_custom_call.1} parent=1 // pred_check_branch
      %2931 = sbr.rel (0) target = $region25
    $region24: #{tpu_custom_call.1} parent=1 // pred_region
      %s2933 = ssub.s32 128, 128
      %2934 = vsyncadd [#allocation3], %s2933
      %s2936 = sshll.u32 [#allocation2], 4
      %s2937 = int_to_ptr.vmem [resolvable:$true] %s2936
      %2939 = dma.vmem_to_hbm [thread:$0]  %s2937, 128, %s5, [#allocation3]
    $region25: #{tpu_custom_call.1} parent=1 // pred_fallthru
      _
    // Predicated region
    $region26: #{tpu_custom_call.1} parent=1 // pred_check
      _
    $region27: #{tpu_custom_call.1} parent=1 // pred_check_branch
      %2941 = sbr.rel (0) target = $region29
    $region28: #{tpu_custom_call.1} parent=1 // pred_region
      %2942 = dma.done [#allocation3], 128
    $region29: #{tpu_custom_call.1} parent=1 // pred_fallthru
      _
    %2943 = vsyncpa [#allocation3], 1

</llo_original>
